<compile_context>
chip_gen: v6e
topology: v6e:2x2x1
jax: 0.10.0
libtpu: 0.0.40
codegen_flags: <defaults>
</compile_context>

<pallas_src>
import functools

import jax
import jax.numpy as jnp
from jax.experimental import pallas as pl
from jax.experimental.pallas import tpu as pltpu

_EPS = 1e-5  # both nn.LayerNorm and nn.BatchNorm2d defaults


def _round_up(v, m):
    return (v + m - 1) // m * m


def _conv_module_kernel(x_ref, w1_ref, w2_ref, p_ref, o_ref, *, cin):
    # x_ref block: (H, W, Cp) for one batch element (batch dim squeezed).
    x = x_ref[...].astype(jnp.float32)
    H, W, Cp = x.shape
    Ep = w2_ref.shape[1]

    # Small per-channel parameters, loaded once:
    #   rows 0..8 : depthwise 3x3 weights (BN scale folded in)
    #   row 9     : depthwise bias (BN folded in)
    #   row 10    : bias of pointwise conv #2
    #   rows 11,12: GLU-half biases of pointwise conv #1 (LN beta folded in)
    pv = p_ref[...].astype(jnp.float32)             # (13, Ep)
    dw_w = pv[0:9]                                  # (9, Ep)
    dw_b = pv[9]
    b2 = pv[10]
    b1a = pv[11]
    b1b = pv[12]

    # ---- LayerNorm statistics over the real Cin channels ----
    # Padded lanes of x are zero, so sums over all Cp lanes equal sums over Cin.
    inv_c = 1.0 / cin
    mu = jnp.sum(x, axis=-1, keepdims=True) * inv_c
    var = jnp.sum(x * x, axis=-1, keepdims=True) * inv_c - mu * mu
    xn = (x - mu) * jax.lax.rsqrt(var + _EPS)
    # (xn is nonzero in padded lanes, but the matching w1 rows are zero.)

    # ---- Pointwise conv #1 (LN affine folded into w1/b1), bf16 on the MXU ----
    y = jnp.dot(xn.reshape(H * W, Cp).astype(jnp.bfloat16), w1_ref[...],
                preferred_element_type=jnp.float32)          # (H*W, 2*Ep)

    # ---- GLU along channels (a = first half, b = second half) ----
    a = y[:, :Ep] + b1a
    b = y[:, Ep:] + b1b
    g = (a * jax.nn.sigmoid(b)).reshape(H, W, Ep)            # padded lanes stay 0

    # ---- Depthwise 3x3 conv, 'same' padding: zero-pad + 9 static slices ----
    zr = jnp.zeros((1, W, Ep), jnp.float32)
    zc = jnp.zeros((H + 2, 1, Ep), jnp.float32)
    gp = jnp.concatenate([zr, g, zr], axis=0)
    gp = jnp.concatenate([zc, gp, zc], axis=1)               # (H+2, W+2, Ep)
    acc = gp[0:H, 0:W, :] * dw_w[0]
    for k in range(1, 9):
        kh, kw = k // 3, k % 3
        acc = acc + gp[kh:kh + H, kw:kw + W, :] * dw_w[k]
    z = acc + dw_b                                           # BN already folded in

    # ---- Swish (SiLU), f32 on the VPU/EUP ----
    z = z * jax.nn.sigmoid(z)

    # ---- Pointwise conv #2, bf16 on the MXU ----
    out = jnp.dot(z.reshape(H * W, Ep).astype(jnp.bfloat16), w2_ref[...],
                  preferred_element_type=jnp.float32) + b2

    # Dropout is identity at inference.
    o_ref[...] = out.reshape(H, W, Ep).astype(o_ref.dtype)


@jax.jit
def convolution_module(x_nchw, params):
    """x_nchw: (N, C, H, W) float32.  Returns (N, E, H, W) (PyTorch layout)."""
    N, Cin, H, W = x_nchw.shape
    E = params["w2"].shape[0]
    Cp = _round_up(Cin, 128)
    Ep = _round_up(E, 128)
    f32 = jnp.float32

    # ---------- one-time constant folding (wrapper side, bit-exact) ----------
    ln_g, ln_b = params["ln_g"][0], params["ln_b"][0]
    w1, b1 = params["w1"], params["b1"][0]                   # (Cin, 2E), (2E,)
    w1f = w1 * ln_g[:, None]                                 # fold LN gamma
    b1f = b1 + ln_b @ w1                                     # fold LN beta

    s = params["bn_g"][0] * jax.lax.rsqrt(params["bn_v"][0] + _EPS)
    dw_wf = params["dw_w"] * s                               # fold BN scale, (9, E)
    dw_bf = params["dw_b"][0] * s + (params["bn_b"][0] - params["bn_m"][0] * s)

    w2, b2 = params["w2"], params["b2"][0]                   # (E, E), (E,)

    # ---------- pad channels to 128 lanes (padded lanes stay exactly zero) ----------
    w1a = jnp.zeros((Cp, Ep), f32).at[:Cin, :E].set(w1f[:, :E])
    w1b = jnp.zeros((Cp, Ep), f32).at[:Cin, :E].set(w1f[:, E:])
    w1p = jnp.concatenate([w1a, w1b], axis=1).astype(jnp.bfloat16)   # (Cp, 2*Ep)
    w2p = jnp.zeros((Ep, Ep), f32).at[:E, :E].set(w2).astype(jnp.bfloat16)

    b1a_p = jnp.zeros((Ep,), f32).at[:E].set(b1f[:E])
    b1b_p = jnp.zeros((Ep,), f32).at[:E].set(b1f[E:])
    dw_wp = jnp.zeros((9, Ep), f32).at[:, :E].set(dw_wf)
    dw_bp = jnp.zeros((Ep,), f32).at[:E].set(dw_bf)
    b2p = jnp.zeros((Ep,), f32).at[:E].set(b2)
    pvec = jnp.concatenate(
        [dw_wp, dw_bp[None], b2p[None], b1a_p[None], b1b_p[None]], axis=0)  # (13, Ep)

    # NCHW -> NHWC + zero-pad channels (single wrapper-side layout pass).
    x = jnp.transpose(x_nchw, (0, 2, 3, 1))
    x = jnp.pad(x, ((0, 0), (0, 0), (0, 0), (0, Cp - Cin)))

    kernel = functools.partial(_conv_module_kernel, cin=Cin)

    # TODO(synk): for production H, W add a row-strip grid axis with a 1-row
    # halo (manual DMA or pl.Element) so intermediates stay bounded on v7x's
    # 64 MiB VMEM; at these sizes one whole image per step fits comfortably.
    out_nhwc = pl.pallas_call(
        kernel,
        out_shape=jax.ShapeDtypeStruct((N, H, W, Ep), x_nchw.dtype),
        grid_spec=pltpu.PrefetchScalarGridSpec(
            num_scalar_prefetch=0,
            grid=(N,),
            in_specs=[
                pl.BlockSpec((pl.Squeezed(), H, W, Cp), lambda n: (n, 0, 0, 0)),
                pl.BlockSpec((Cp, 2 * Ep), lambda n: (0, 0)),
                pl.BlockSpec((Ep, Ep), lambda n: (0, 0)),
                pl.BlockSpec((13, Ep), lambda n: (0, 0)),
            ],
            out_specs=pl.BlockSpec((pl.Squeezed(), H, W, Ep), lambda n: (n, 0, 0, 0)),
        ),
        compiler_params=pltpu.CompilerParams(
            dimension_semantics=("parallel",),
            vmem_limit_bytes=32 * 1024 * 1024,
        ),
    )(x, w1p, w2p, pvec)

    # Slice away channel padding, back to NCHW.
    return jnp.transpose(out_nhwc[..., :E], (0, 3, 1, 2))


def init_params(key, dim_model, dim_expand):
    """Deterministic synthetic parameters (shapes match the PyTorch module)."""
    k1, k2, k3, k4, k5, k6 = jax.random.split(key, 6)
    f32 = jnp.float32
    return {
        "ln_g": jnp.ones((1, dim_model), f32),
        "ln_b": jnp.zeros((1, dim_model), f32),
        "w1": 0.05 * jax.random.normal(k1, (dim_model, 2 * dim_expand), f32),
        "b1": 0.05 * jax.random.normal(k2, (1, 2 * dim_expand), f32),
        "dw_w": 0.1 * jax.random.normal(k3, (9, dim_expand), f32),   # (kh*3+kw, C)
        "dw_b": 0.05 * jax.random.normal(k4, (1, dim_expand), f32),
        "bn_g": jnp.ones((1, dim_expand), f32),
        "bn_b": jnp.zeros((1, dim_expand), f32),
        "bn_m": jnp.zeros((1, dim_expand), f32),
        "bn_v": jnp.ones((1, dim_expand), f32),
        "w2": 0.05 * jax.random.normal(k5, (dim_expand, dim_expand), f32),
        "b2": 0.05 * jax.random.normal(k6, (1, dim_expand), f32),
    }


def _reference(x_nchw, params):
    """Pure-JAX reference mirroring the PyTorch module (eval mode)."""
    x = jnp.transpose(x_nchw, (0, 2, 3, 1))
    mu = x.mean(-1, keepdims=True)
    var = ((x - mu) ** 2).mean(-1, keepdims=True)
    xn = (x - mu) * jax.lax.rsqrt(var + _EPS) * params["ln_g"][0] + params["ln_b"][0]
    y = xn @ params["w1"] + params["b1"][0]
    E = params["w2"].shape[0]
    a, b = y[..., :E], y[..., E:]
    g = a * jax.nn.sigmoid(b)
    H, W = g.shape[1], g.shape[2]
    gp = jnp.pad(g, ((0, 0), (1, 1), (1, 1), (0, 0)))
    acc = jnp.zeros_like(g)
    for kh in range(3):
        for kw in range(3):
            acc = acc + gp[:, kh:kh + H, kw:kw + W, :] * params["dw_w"][kh * 3 + kw]
    acc = acc + params["dw_b"][0]
    z = ((acc - params["bn_m"][0]) * jax.lax.rsqrt(params["bn_v"][0] + _EPS)
         * params["bn_g"][0] + params["bn_b"][0])
    z = z * jax.nn.sigmoid(z)
    out = z @ params["w2"] + params["b2"][0]
    return jnp.transpose(out, (0, 3, 1, 2))


if __name__ == "__main__":
    key = jax.random.PRNGKey(0)
    kx, kp = jax.random.split(key)

    N, dim_model, dim_expand, H, W = 2, 32, 32, 16, 16
    x = jax.random.normal(kx, (N, dim_model, H, W), jnp.float32)   # NCHW like PyTorch
    params = init_params(kp, dim_model, dim_expand)

    out = convolution_module(x, params)
    out = jax.block_until_ready(out)
    assert out.shape == (N, dim_expand, H, W)
    assert bool(jnp.all(jnp.isfinite(out)))

    ref = _reference(x, params)
    err = float(jnp.max(jnp.abs(out - ref)))
    assert err < 5e-2, f"max abs error vs reference: {err}"

    print("KERNEL_OK")
</pallas_src>

<mosaic_0001>
module attributes {stable_mosaic.version = 11 : i64} {
  func.func @_conv_module_kernel(%arg0: i32, %arg1: memref<1x16x16x128xf32, #tpu.memory_space<vmem>>, %arg2: memref<128x256xbf16, #tpu.memory_space<vmem>>, %arg3: memref<128x128xbf16, #tpu.memory_space<vmem>>, %arg4: memref<13x128xf32, #tpu.memory_space<vmem>>, %arg5: memref<1x16x16x128xf32, #tpu.memory_space<vmem>>) attributes {dimension_semantics = [#tpu.dimension_semantics<parallel>], iteration_bounds = array<i64: 2>, scalar_prefetch = 0 : i64, scratch_operands = 0 : i64, tpu.core_type = #tpu.core_type<tc>, window_params = [{transform_indices = @transform_0, window_bounds = array<i64: 1, 16, 16, 128>}, {pipeline_mode = #tpu.pipeline_mode<synchronous>, transform_indices = @transform_1, window_bounds = array<i64: 128, 256>}, {pipeline_mode = #tpu.pipeline_mode<synchronous>, transform_indices = @transform_2, window_bounds = array<i64: 128, 128>}, {pipeline_mode = #tpu.pipeline_mode<synchronous>, transform_indices = @transform_3, window_bounds = array<i64: 13, 128>}, {transform_indices = @transform_4, window_bounds = array<i64: 1, 16, 16, 128>}]} {
    %c0 = arith.constant 0 : index
    %c0_0 = arith.constant 0 : index
    %c0_1 = arith.constant 0 : index
    %c0_2 = arith.constant 0 : index
    %0 = vector.load %arg1[%c0, %c0_0, %c0_1, %c0_2] : memref<1x16x16x128xf32, #tpu.memory_space<vmem>>, vector<1x16x16x128xf32>
    %1 = vector.shape_cast %0 : vector<1x16x16x128xf32> to vector<16x16x128xf32>
    %c0_3 = arith.constant 0 : index
    %c0_4 = arith.constant 0 : index
    %2 = vector.load %arg4[%c0_3, %c0_4] : memref<13x128xf32, #tpu.memory_space<vmem>>, vector<13x128xf32>
    %3 = vector.extract_strided_slice %2 {offsets = [0, 0], sizes = [9, 128], strides = [1, 1]} : vector<13x128xf32> to vector<9x128xf32>
    %4 = vector.extract_strided_slice %2 {offsets = [9, 0], sizes = [1, 128], strides = [1, 1]} : vector<13x128xf32> to vector<1x128xf32>
    %5 = vector.shape_cast %4 : vector<1x128xf32> to vector<128xf32>
    %6 = vector.extract_strided_slice %2 {offsets = [10, 0], sizes = [1, 128], strides = [1, 1]} : vector<13x128xf32> to vector<1x128xf32>
    %7 = vector.shape_cast %6 : vector<1x128xf32> to vector<128xf32>
    %8 = vector.extract_strided_slice %2 {offsets = [11, 0], sizes = [1, 128], strides = [1, 1]} : vector<13x128xf32> to vector<1x128xf32>
    %9 = vector.shape_cast %8 : vector<1x128xf32> to vector<128xf32>
    %10 = vector.extract_strided_slice %2 {offsets = [12, 0], sizes = [1, 128], strides = [1, 1]} : vector<13x128xf32> to vector<1x128xf32>
    %11 = vector.shape_cast %10 : vector<1x128xf32> to vector<128xf32>
    %cst = arith.constant dense<0.000000e+00> : vector<16x16xf32>
    %12 = vector.multi_reduction <add>, %1, %cst [2] : vector<16x16x128xf32> to vector<16x16xf32>
    %13 = vector.shape_cast %12 : vector<16x16xf32> to vector<16x16x1xf32>
    %cst_5 = arith.constant 3.125000e-02 : f32
    %14 = vector.broadcast %cst_5 : f32 to vector<16x16x1xf32>
    %15 = arith.mulf %13, %14 : vector<16x16x1xf32>
    %16 = arith.mulf %1, %1 : vector<16x16x128xf32>
    %cst_6 = arith.constant dense<0.000000e+00> : vector<16x16xf32>
    %17 = vector.multi_reduction <add>, %16, %cst_6 [2] : vector<16x16x128xf32> to vector<16x16xf32>
    %18 = vector.shape_cast %17 : vector<16x16xf32> to vector<16x16x1xf32>
    %cst_7 = arith.constant 3.125000e-02 : f32
    %19 = vector.broadcast %cst_7 : f32 to vector<16x16x1xf32>
    %20 = arith.mulf %18, %19 : vector<16x16x1xf32>
    %21 = arith.mulf %15, %15 : vector<16x16x1xf32>
    %22 = arith.subf %20, %21 : vector<16x16x1xf32>
    %23 = vector.broadcast %15 : vector<16x16x1xf32> to vector<16x16x128xf32>
    %24 = arith.subf %1, %23 : vector<16x16x128xf32>
    %cst_8 = arith.constant 9.99999974E-6 : f32
    %25 = vector.broadcast %cst_8 : f32 to vector<16x16x1xf32>
    %26 = arith.addf %22, %25 : vector<16x16x1xf32>
    %27 = math.rsqrt %26 : vector<16x16x1xf32>
    %28 = vector.broadcast %27 : vector<16x16x1xf32> to vector<16x16x128xf32>
    %29 = arith.mulf %24, %28 : vector<16x16x128xf32>
    %30 = vector.shape_cast %29 : vector<16x16x128xf32> to vector<256x128xf32>
    %31 = arith.truncf %30 : vector<256x128xf32> to vector<256x128xbf16>
    %c0_9 = arith.constant 0 : index
    %c0_10 = arith.constant 0 : index
    %32 = vector.load %arg2[%c0_9, %c0_10] : memref<128x256xbf16, #tpu.memory_space<vmem>>, vector<128x256xbf16>
    %cst_11 = arith.constant dense<0.000000e+00> : vector<256x256xf32>
    %33 = tpu.matmul %31, %32, %cst_11 {dimension_numbers = #tpu.dot_dimension_numbers<[1], [0], [0], [1], [0, 0, 1, 1], [], []>} : vector<256x128xbf16>, vector<128x256xbf16>, vector<256x256xf32> -> vector<256x256xf32>
    %34 = vector.extract_strided_slice %33 {offsets = [0, 0], sizes = [256, 128], strides = [1, 1]} : vector<256x256xf32> to vector<256x128xf32>
    %35 = vector.shape_cast %9 : vector<128xf32> to vector<1x128xf32>
    %36 = vector.broadcast %35 : vector<1x128xf32> to vector<256x128xf32>
    %37 = arith.addf %34, %36 : vector<256x128xf32>
    %38 = vector.extract_strided_slice %33 {offsets = [0, 128], sizes = [256, 128], strides = [1, 1]} : vector<256x256xf32> to vector<256x128xf32>
    %39 = vector.shape_cast %11 : vector<128xf32> to vector<1x128xf32>
    %40 = vector.broadcast %39 : vector<1x128xf32> to vector<256x128xf32>
    %41 = arith.addf %38, %40 : vector<256x128xf32>
    %42 = arith.negf %41 : vector<256x128xf32>
    %43 = math.exp %42 : vector<256x128xf32>
    %cst_12 = arith.constant 1.000000e+00 : f32
    %44 = vector.broadcast %cst_12 : f32 to vector<256x128xf32>
    %45 = arith.addf %44, %43 : vector<256x128xf32>
    %46 = arith.divf %44, %45 : vector<256x128xf32>
    %47 = arith.mulf %37, %46 : vector<256x128xf32>
    %48 = vector.shape_cast %47 : vector<256x128xf32> to vector<16x16x128xf32>
    %cst_13 = arith.constant 0.000000e+00 : f32
    %49 = vector.broadcast %cst_13 : f32 to vector<1x16x128xf32>
    %cst_14 = arith.constant 0.000000e+00 : f32
    %50 = vector.broadcast %cst_14 : f32 to vector<18x1x128xf32>
    %51 = tpu.concatenate %49, %48, %49 in 0 : vector<1x16x128xf32>, vector<16x16x128xf32>, vector<1x16x128xf32> -> vector<18x16x128xf32>
    %52 = tpu.concatenate %50, %51, %50 in 1 : vector<18x1x128xf32>, vector<18x16x128xf32>, vector<18x1x128xf32> -> vector<18x18x128xf32>
    %53 = vector.extract_strided_slice %52 {offsets = [0, 0, 0], sizes = [16, 16, 128], strides = [1, 1, 1]} : vector<18x18x128xf32> to vector<16x16x128xf32>
    %54 = vector.extract_strided_slice %3 {offsets = [0, 0], sizes = [1, 128], strides = [1, 1]} : vector<9x128xf32> to vector<1x128xf32>
    %55 = vector.shape_cast %54 : vector<1x128xf32> to vector<128xf32>
    %56 = vector.shape_cast %55 : vector<128xf32> to vector<1x1x128xf32>
    %57 = vector.broadcast %56 : vector<1x1x128xf32> to vector<16x16x128xf32>
    %58 = arith.mulf %53, %57 : vector<16x16x128xf32>
    %59 = vector.extract_strided_slice %52 {offsets = [0, 1, 0], sizes = [16, 16, 128], strides = [1, 1, 1]} : vector<18x18x128xf32> to vector<16x16x128xf32>
    %60 = vector.extract_strided_slice %3 {offsets = [1, 0], sizes = [1, 128], strides = [1, 1]} : vector<9x128xf32> to vector<1x128xf32>
    %61 = vector.shape_cast %60 : vector<1x128xf32> to vector<128xf32>
    %62 = vector.shape_cast %61 : vector<128xf32> to vector<1x1x128xf32>
    %63 = vector.broadcast %62 : vector<1x1x128xf32> to vector<16x16x128xf32>
    %64 = arith.mulf %59, %63 : vector<16x16x128xf32>
    %65 = arith.addf %58, %64 : vector<16x16x128xf32>
    %66 = vector.extract_strided_slice %52 {offsets = [0, 2, 0], sizes = [16, 16, 128], strides = [1, 1, 1]} : vector<18x18x128xf32> to vector<16x16x128xf32>
    %67 = vector.extract_strided_slice %3 {offsets = [2, 0], sizes = [1, 128], strides = [1, 1]} : vector<9x128xf32> to vector<1x128xf32>
    %68 = vector.shape_cast %67 : vector<1x128xf32> to vector<128xf32>
    %69 = vector.shape_cast %68 : vector<128xf32> to vector<1x1x128xf32>
    %70 = vector.broadcast %69 : vector<1x1x128xf32> to vector<16x16x128xf32>
    %71 = arith.mulf %66, %70 : vector<16x16x128xf32>
    %72 = arith.addf %65, %71 : vector<16x16x128xf32>
    %73 = vector.extract_strided_slice %52 {offsets = [1, 0, 0], sizes = [16, 16, 128], strides = [1, 1, 1]} : vector<18x18x128xf32> to vector<16x16x128xf32>
    %74 = vector.extract_strided_slice %3 {offsets = [3, 0], sizes = [1, 128], strides = [1, 1]} : vector<9x128xf32> to vector<1x128xf32>
    %75 = vector.shape_cast %74 : vector<1x128xf32> to vector<128xf32>
    %76 = vector.shape_cast %75 : vector<128xf32> to vector<1x1x128xf32>
    %77 = vector.broadcast %76 : vector<1x1x128xf32> to vector<16x16x128xf32>
    %78 = arith.mulf %73, %77 : vector<16x16x128xf32>
    %79 = arith.addf %72, %78 : vector<16x16x128xf32>
    %80 = vector.extract_strided_slice %52 {offsets = [1, 1, 0], sizes = [16, 16, 128], strides = [1, 1, 1]} : vector<18x18x128xf32> to vector<16x16x128xf32>
    %81 = vector.extract_strided_slice %3 {offsets = [4, 0], sizes = [1, 128], strides = [1, 1]} : vector<9x128xf32> to vector<1x128xf32>
    %82 = vector.shape_cast %81 : vector<1x128xf32> to vector<128xf32>
    %83 = vector.shape_cast %82 : vector<128xf32> to vector<1x1x128xf32>
    %84 = vector.broadcast %83 : vector<1x1x128xf32> to vector<16x16x128xf32>
    %85 = arith.mulf %80, %84 : vector<16x16x128xf32>
    %86 = arith.addf %79, %85 : vector<16x16x128xf32>
    %87 = vector.extract_strided_slice %52 {offsets = [1, 2, 0], sizes = [16, 16, 128], strides = [1, 1, 1]} : vector<18x18x128xf32> to vector<16x16x128xf32>
    %88 = vector.extract_strided_slice %3 {offsets = [5, 0], sizes = [1, 128], strides = [1, 1]} : vector<9x128xf32> to vector<1x128xf32>
    %89 = vector.shape_cast %88 : vector<1x128xf32> to vector<128xf32>
    %90 = vector.shape_cast %89 : vector<128xf32> to vector<1x1x128xf32>
    %91 = vector.broadcast %90 : vector<1x1x128xf32> to vector<16x16x128xf32>
    %92 = arith.mulf %87, %91 : vector<16x16x128xf32>
    %93 = arith.addf %86, %92 : vector<16x16x128xf32>
    %94 = vector.extract_strided_slice %52 {offsets = [2, 0, 0], sizes = [16, 16, 128], strides = [1, 1, 1]} : vector<18x18x128xf32> to vector<16x16x128xf32>
    %95 = vector.extract_strided_slice %3 {offsets = [6, 0], sizes = [1, 128], strides = [1, 1]} : vector<9x128xf32> to vector<1x128xf32>
    %96 = vector.shape_cast %95 : vector<1x128xf32> to vector<128xf32>
    %97 = vector.shape_cast %96 : vector<128xf32> to vector<1x1x128xf32>
    %98 = vector.broadcast %97 : vector<1x1x128xf32> to vector<16x16x128xf32>
    %99 = arith.mulf %94, %98 : vector<16x16x128xf32>
    %100 = arith.addf %93, %99 : vector<16x16x128xf32>
    %101 = vector.extract_strided_slice %52 {offsets = [2, 1, 0], sizes = [16, 16, 128], strides = [1, 1, 1]} : vector<18x18x128xf32> to vector<16x16x128xf32>
    %102 = vector.extract_strided_slice %3 {offsets = [7, 0], sizes = [1, 128], strides = [1, 1]} : vector<9x128xf32> to vector<1x128xf32>
    %103 = vector.shape_cast %102 : vector<1x128xf32> to vector<128xf32>
    %104 = vector.shape_cast %103 : vector<128xf32> to vector<1x1x128xf32>
    %105 = vector.broadcast %104 : vector<1x1x128xf32> to vector<16x16x128xf32>
    %106 = arith.mulf %101, %105 : vector<16x16x128xf32>
    %107 = arith.addf %100, %106 : vector<16x16x128xf32>
    %108 = vector.extract_strided_slice %52 {offsets = [2, 2, 0], sizes = [16, 16, 128], strides = [1, 1, 1]} : vector<18x18x128xf32> to vector<16x16x128xf32>
    %109 = vector.extract_strided_slice %3 {offsets = [8, 0], sizes = [1, 128], strides = [1, 1]} : vector<9x128xf32> to vector<1x128xf32>
    %110 = vector.shape_cast %109 : vector<1x128xf32> to vector<128xf32>
    %111 = vector.shape_cast %110 : vector<128xf32> to vector<1x1x128xf32>
    %112 = vector.broadcast %111 : vector<1x1x128xf32> to vector<16x16x128xf32>
    %113 = arith.mulf %108, %112 : vector<16x16x128xf32>
    %114 = arith.addf %107, %113 : vector<16x16x128xf32>
    %115 = vector.shape_cast %5 : vector<128xf32> to vector<1x1x128xf32>
    %116 = vector.broadcast %115 : vector<1x1x128xf32> to vector<16x16x128xf32>
    %117 = arith.addf %114, %116 : vector<16x16x128xf32>
    %118 = arith.negf %117 : vector<16x16x128xf32>
    %119 = math.exp %118 : vector<16x16x128xf32>
    %cst_15 = arith.constant 1.000000e+00 : f32
    %120 = vector.broadcast %cst_15 : f32 to vector<16x16x128xf32>
    %121 = arith.addf %120, %119 : vector<16x16x128xf32>
    %122 = arith.divf %120, %121 : vector<16x16x128xf32>
    %123 = arith.mulf %117, %122 : vector<16x16x128xf32>
    %124 = vector.shape_cast %123 : vector<16x16x128xf32> to vector<256x128xf32>
    %125 = arith.truncf %124 : vector<256x128xf32> to vector<256x128xbf16>
    %c0_16 = arith.constant 0 : index
    %c0_17 = arith.constant 0 : index
    %126 = vector.load %arg3[%c0_16, %c0_17] : memref<128x128xbf16, #tpu.memory_space<vmem>>, vector<128x128xbf16>
    %cst_18 = arith.constant dense<0.000000e+00> : vector<256x128xf32>
    %127 = tpu.matmul %125, %126, %cst_18 {dimension_numbers = #tpu.dot_dimension_numbers<[1], [0], [0], [1], [0, 0, 1, 1], [], []>} : vector<256x128xbf16>, vector<128x128xbf16>, vector<256x128xf32> -> vector<256x128xf32>
    %128 = vector.shape_cast %7 : vector<128xf32> to vector<1x128xf32>
    %129 = vector.broadcast %128 : vector<1x128xf32> to vector<256x128xf32>
    %130 = arith.addf %127, %129 : vector<256x128xf32>
    %131 = vector.shape_cast %130 : vector<256x128xf32> to vector<16x16x128xf32>
    %c0_19 = arith.constant 0 : index
    %c0_20 = arith.constant 0 : index
    %c0_21 = arith.constant 0 : index
    %c0_22 = arith.constant 0 : index
    %132 = vector.load %arg5[%c0_19, %c0_20, %c0_21, %c0_22] : memref<1x16x16x128xf32, #tpu.memory_space<vmem>>, vector<1x16x16x128xf32>
    %133 = vector.shape_cast %132 : vector<1x16x16x128xf32> to vector<16x16x128xf32>
    %134 = vector.shape_cast %131 : vector<16x16x128xf32> to vector<1x16x16x128xf32>
    tpu.vector_store %arg5[%c0_19, %c0_20, %c0_21, %c0_22], %134 {strides = array<i32>} : memref<1x16x16x128xf32, #tpu.memory_space<vmem>>, vector<1x16x16x128xf32>,
    return
  }
  func.func @transform_0(%arg0: i32) -> (i32, i32, i32, i32) {
    %c0_i32 = arith.constant 0 : i32
    %c0_i32_0 = arith.constant 0 : i32
    %c0_i32_1 = arith.constant 0 : i32
    %c0_i32_2 = arith.constant 0 : i32
    return %arg0, %c0_i32, %c0_i32_0, %c0_i32_1 : i32, i32, i32, i32
  }
  func.func @transform_1(%arg0: i32) -> (i32, i32) {
    %c0_i32 = arith.constant 0 : i32
    %c0_i32_0 = arith.constant 0 : i32
    %c0_i32_1 = arith.constant 0 : i32
    return %c0_i32, %c0_i32_0 : i32, i32
  }
  func.func @transform_2(%arg0: i32) -> (i32, i32) {
    %c0_i32 = arith.constant 0 : i32
    %c0_i32_0 = arith.constant 0 : i32
    %c0_i32_1 = arith.constant 0 : i32
    return %c0_i32, %c0_i32_0 : i32, i32
  }
  func.func @transform_3(%arg0: i32) -> (i32, i32) {
    %c0_i32 = arith.constant 0 : i32
    %c0_i32_0 = arith.constant 0 : i32
    %c0_i32_1 = arith.constant 0 : i32
    return %c0_i32, %c0_i32_0 : i32, i32
  }
  func.func @transform_4(%arg0: i32) -> (i32, i32, i32, i32) {
    %c0_i32 = arith.constant 0 : i32
    %c0_i32_0 = arith.constant 0 : i32
    %c0_i32_1 = arith.constant 0 : i32
    %c0_i32_2 = arith.constant 0 : i32
    return %arg0, %c0_i32, %c0_i32_0, %c0_i32_1 : i32, i32, i32, i32
  }
}

</mosaic_0001>

<llo_original>
// kernel: convolution_module.1
$region0: #{convolution_module.1}
  #allocation0 [shape = 'u32[]', space=smem, size = 0x4, offset = 0x4, fixed_abs, tag = 'smem constant byte address 0x4 - core index']
  #allocation1 [shape = 'u32[144,128]{1,0:T(1,128)}', space=vmem, size = 0x12000, scoped, tag = 'internal scratch']
  %s0 = inlined_call_operand.vmem [shape: f32[2,16,16,128], index: 0, kind: input, shape index: {}]
  %s1 = inlined_call_operand.vmem [shape: bf16[128,256], index: 1, kind: input, shape index: {}]
  %s2 = inlined_call_operand.vmem [shape: bf16[128,128], index: 2, kind: input, shape index: {}]
  %s3 = inlined_call_operand.vmem [shape: f32[13,128], index: 3, kind: input, shape index: {}]
  %s4 = inlined_call_operand.vmem [shape: f32[2,16,16,128], index: 4, kind: output, shape index: {}]
  %s5 = sld [smem:[#allocation0]]
  $region49: #{convolution_module.1} parent=0
    _
  %s7 = ssub.s32 1, %s5
  %s8 = scalar_select 0, %s7, %s5
  loop: start=0, step=1, limit=4
  $region2: #{convolution_module.1} parent=0 // loop_pre_header
    _
  $region3: #{convolution_module.1} parent=0 // loop_header
    %s10 = sphi 0, %s14
    %p11 = scmp.ge.s32.totalorder %s10, 4
    %s20 = sphi 0, %s22
    %s23 = sphi 0, %s20
    %s24 = sphi 0, %s23
    %s40 = sphi 0, %s24
    %s44 = sphi 0, %s44
    %s46 = sphi 0, %s44
    %s47 = sphi 0, %s46
    %s61 = sphi 0, %s47
    %s65 = sphi 0, %s65
    %s67 = sphi 0, %s65
    %s68 = sphi 0, %s67
    %s82 = sphi 0, %s68
    %s86 = sphi 0, %s86
    %s88 = sphi 0, %s86
    %s89 = sphi 0, %s88
    %s103 = sphi 0, %s89
    %s109 = sphi 0, %s111
    %s112 = sphi 0, %s109
    %s113 = sphi 0, %s112
    %s129 = sphi 0, %s113
  $region4: #{convolution_module.1} parent=0 // loop_header_branch
    %13 = sbr.rel (%p11) target = $region8
  $region5: #{convolution_module.1} parent=0 // loop_body
    %s15 = ssub.s32 %s10, 1
    %s16 = ssub.s32 %s10, 2
    %s17 = sadd.s32 %s10, 1
    %s18 = ssub.s32 %s10, %s17
    %p19 = scmp.eq.s32.totalorder %s18, 0
    %s21 = sadd.s32 %s20, 1
    %s22 = scalar_select %p19, %s20, %s21
    %p25 = pneg %p19
    %p26 = scmp.eq.s32.totalorder %s10, 1
    %p27 = por %p25, %p26
    %p28 = scmp.ne.s32.totalorder %s20, %s23
    %p29 = scmp.eq.s32.totalorder %s10, 0
    %p30 = por %p28, %p29
    %p31 = scmp.ne.s32.totalorder %s20, %s23
    %p32 = scmp.eq.s32.totalorder %s15, 1
    %p33 = por %p31, %p32
    %p34 = scmp.ne.s32.totalorder %s23, %s24
    %p35 = scmp.eq.s32.totalorder %s15, 0
    %p36 = por %p34, %p35
    %p37 = scmp.ne.s32.totalorder %s23, %s24
    %p38 = scmp.eq.s32.totalorder %s16, 1
    %p39 = por %p37, %p38
    %p41 = scmp.ne.s32.totalorder %s24, %s40
    %p42 = scmp.eq.s32.totalorder %s16, 0
    %p43 = por %p41, %p42
    %s45 = sadd.s32 %s44, 1
    %p48 = scmp.eq.s32.totalorder %s10, 1
    %p49 = scmp.ne.s32.totalorder %s44, %s46
    %p50 = scmp.eq.s32.totalorder %s10, 0
    %p51 = por %p49, %p50
    %p52 = scmp.ne.s32.totalorder %s44, %s46
    %p53 = scmp.eq.s32.totalorder %s15, 1
    %p54 = por %p52, %p53
    %p55 = scmp.ne.s32.totalorder %s46, %s47
    %p56 = scmp.eq.s32.totalorder %s15, 0
    %p57 = por %p55, %p56
    %p58 = scmp.ne.s32.totalorder %s46, %s47
    %p59 = scmp.eq.s32.totalorder %s16, 1
    %p60 = por %p58, %p59
    %p62 = scmp.ne.s32.totalorder %s47, %s61
    %p63 = scmp.eq.s32.totalorder %s16, 0
    %p64 = por %p62, %p63
    %s66 = sadd.s32 %s65, 1
    %p69 = scmp.eq.s32.totalorder %s10, 1
    %p70 = scmp.ne.s32.totalorder %s65, %s67
    %p71 = scmp.eq.s32.totalorder %s10, 0
    %p72 = por %p70, %p71
    %p73 = scmp.ne.s32.totalorder %s65, %s67
    %p74 = scmp.eq.s32.totalorder %s15, 1
    %p75 = por %p73, %p74
    %p76 = scmp.ne.s32.totalorder %s67, %s68
    %p77 = scmp.eq.s32.totalorder %s15, 0
    %p78 = por %p76, %p77
    %p79 = scmp.ne.s32.totalorder %s67, %s68
    %p80 = scmp.eq.s32.totalorder %s16, 1
    %p81 = por %p79, %p80
    %p83 = scmp.ne.s32.totalorder %s68, %s82
    %p84 = scmp.eq.s32.totalorder %s16, 0
    %p85 = por %p83, %p84
    %s87 = sadd.s32 %s86, 1
    %p90 = scmp.eq.s32.totalorder %s10, 1
    %p91 = scmp.ne.s32.totalorder %s86, %s88
    %p92 = scmp.eq.s32.totalorder %s10, 0
    %p93 = por %p91, %p92
    %p94 = scmp.ne.s32.totalorder %s86, %s88
    %p95 = scmp.eq.s32.totalorder %s15, 1
    %p96 = por %p94, %p95
    %p97 = scmp.ne.s32.totalorder %s88, %s89
    %p98 = scmp.eq.s32.totalorder %s15, 0
    %p99 = por %p97, %p98
    %p100 = scmp.ne.s32.totalorder %s88, %s89
    %p101 = scmp.eq.s32.totalorder %s16, 1
    %p102 = por %p100, %p101
    %p104 = scmp.ne.s32.totalorder %s89, %s103
    %p105 = scmp.eq.s32.totalorder %s16, 0
    %p106 = por %p104, %p105
    %s107 = ssub.s32 %s10, %s17
    %p108 = scmp.eq.s32.totalorder %s107, 0
    %s110 = sadd.s32 %s109, 1
    %s111 = scalar_select %p108, %s109, %s110
    %p114 = pneg %p108
    %p115 = scmp.eq.s32.totalorder %s10, 1
    %p116 = por %p114, %p115
    %p117 = scmp.ne.s32.totalorder %s109, %s112
    %p118 = scmp.eq.s32.totalorder %s10, 0
    %p119 = por %p117, %p118
    %p120 = scmp.ne.s32.totalorder %s109, %s112
    %p121 = scmp.eq.s32.totalorder %s15, 1
    %p122 = por %p120, %p121
    %p123 = scmp.ne.s32.totalorder %s112, %s113
    %p124 = scmp.eq.s32.totalorder %s15, 0
    %p125 = por %p123, %p124
    %p126 = scmp.ne.s32.totalorder %s112, %s113
    %p127 = scmp.eq.s32.totalorder %s16, 1
    %p128 = por %p126, %p127
    %p130 = scmp.ne.s32.totalorder %s113, %s129
    %p131 = scmp.eq.s32.totalorder %s16, 0
    %p132 = por %p130, %p131
    %p133 = scmp.le.s32.totalorder 1, %s10
    %p134 = scmp.lt.s32.totalorder %s10, 3
    %p135 = pnand %p133, %p134
    %p136 = pneg %p135
    // Predicated region
    $region9: #{convolution_module.1} parent=5 // pred_check
      _
    $region10: #{convolution_module.1} parent=5 // pred_check_branch
      %138 = sbr.rel (%p135) target = $region12
    $region11: #{convolution_module.1} parent=5 // pred_region
      %s139 = ssub.s32 %s10, 1
      // Predicated region
      $region13: #{convolution_module.1} parent=11 // pred_check
        %p140 = pneg %p57
      $region14: #{convolution_module.1} parent=11 // pred_check_branch
        %142 = sbr.rel (%p140) target = $region16
      $region15: #{convolution_module.1} parent=11 // pred_region
        _
      $region16: #{convolution_module.1} parent=11 // pred_fallthru
        _
      // Predicated region
      $region17: #{convolution_module.1} parent=11 // pred_check
        %p143 = pneg %p78
      $region18: #{convolution_module.1} parent=11 // pred_check_branch
        %145 = sbr.rel (%p143) target = $region20
      $region19: #{convolution_module.1} parent=11 // pred_region
        _
      $region20: #{convolution_module.1} parent=11 // pred_fallthru
        _
      // Predicated region
      $region21: #{convolution_module.1} parent=11 // pred_check
        %p146 = pneg %p99
      $region22: #{convolution_module.1} parent=11 // pred_check_branch
        %148 = sbr.rel (%p146) target = $region24
      $region23: #{convolution_module.1} parent=11 // pred_region
        _
      $region24: #{convolution_module.1} parent=11 // pred_fallthru
        _
    $region12: #{convolution_module.1} parent=5 // pred_fallthru
      _
    %p149 = scmp.lt.s32.totalorder %s10, 2
    // Predicated region
    $region25: #{convolution_module.1} parent=5 // pred_check
      %p150 = pneg %p149
    $region26: #{convolution_module.1} parent=5 // pred_check_branch
      %152 = sbr.rel (%p150) target = $region28
    $region27: #{convolution_module.1} parent=5 // pred_region
      // Predicated region
      $region29: #{convolution_module.1} parent=27 // pred_check
        %p153 = pneg %p30
      $region30: #{convolution_module.1} parent=27 // pred_check_branch
        %155 = sbr.rel (%p153) target = $region32
      $region31: #{convolution_module.1} parent=27 // pred_region
        %p156 = scmp.lt.s32.totalorder %s10, 1
        %s157 = scalar_select %p156, %s10, 1
        %s158 = smul.addr %s157, 32
        %s159 = smul.addr %s158, 8
        %s160 = scalar_lea.vmem %s0, %s159
      $region32: #{convolution_module.1} parent=27 // pred_fallthru
        _
    $region28: #{convolution_module.1} parent=5 // pred_fallthru
      _
    %p161 = scmp.le.s32.totalorder 1, %s10
    %p162 = scmp.lt.s32.totalorder %s10, 3
    %p163 = pnand %p161, %p162
    %p164 = pneg %p163
    // Predicated region
    $region33: #{convolution_module.1} parent=5 // pred_check
      _
    $region34: #{convolution_module.1} parent=5 // pred_check_branch
      %166 = sbr.rel (%p163) target = $region36
    $region35: #{convolution_module.1} parent=5 // pred_region
      %s167 = ssub.s32 %s10, 1
      %p168 = scmp.lt.s32.totalorder %s15, 1
      %s169 = scalar_select %p168, %s15, 1
      %s170 = smul.addr %s169, 32
      %s171 = smul.addr %s170, 8
      %s172 = scalar_lea.vmem %s0, %s171
      %p173 = pneg %p36
      %p174 = pneg %p33
      %p175 = pneg %p57
      %p176 = pneg %p54
      %p177 = pneg %p78
      %p178 = pneg %p75
      %p179 = pneg %p99
      %p180 = pneg %p96
      %p181 = pneg %p125
      %p182 = pneg %p122
      %p183 = scmp.lt.s32.totalorder %s15, 1
      %s184 = scalar_select %p183, %s15, 1
      %s185 = smul.addr %s184, 32
      %s186 = smul.addr %s185, 8
      %s187 = scalar_lea.vmem %s4, %s186
      %p188 = scmp.lt.s32.totalorder %s15, 1
      %s189 = scalar_select %p188, %s15, 1
      %s190 = smul.addr %s189, 32
      %s191 = smul.addr %s190, 8
      %s192 = scalar_lea.vmem %s0, %s191
      %p193 = scmp.lt.s32.totalorder %s15, 1
      %s194 = scalar_select %p193, %s15, 1
      %s195 = smul.addr %s194, 32
      %s196 = smul.addr %s195, 8
      %s197 = scalar_lea.vmem %s4, %s196
      %v199 = vld [vmem:[%s192] sm:$0xff]
      %v200 = vld [vmem:[%s192 + $0x8] sm:$0xff]
      %v201 = vld [vmem:[%s192 + $0x10] sm:$0xff]
      %v202 = vld [vmem:[%s192 + $0x18] sm:$0xff]
      %v203 = vld [vmem:[%s192 + $0x20] sm:$0xff]
      %v204 = vld [vmem:[%s192 + $0x28] sm:$0xff]
      %v205 = vld [vmem:[%s192 + $0x30] sm:$0xff]
      %v206 = vld [vmem:[%s192 + $0x38] sm:$0xff]
      %v207 = vld [vmem:[%s192 + $0x40] sm:$0xff]
      %v208 = vld [vmem:[%s192 + $0x48] sm:$0xff]
      %v209 = vld [vmem:[%s192 + $0x50] sm:$0xff]
      %v210 = vld [vmem:[%s192 + $0x58] sm:$0xff]
      %v211 = vld [vmem:[%s192 + $0x60] sm:$0xff]
      %v212 = vld [vmem:[%s192 + $0x68] sm:$0xff]
      %v213 = vld [vmem:[%s192 + $0x70] sm:$0xff]
      %v214 = vld [vmem:[%s192 + $0x78] sm:$0xff]
      %v215 = vld [vmem:[%s192 + $0x80] sm:$0xff]
      %v216 = vld [vmem:[%s192 + $0x88] sm:$0xff]
      %v217 = vld [vmem:[%s192 + $0x90] sm:$0xff]
      %v218 = vld [vmem:[%s192 + $0x98] sm:$0xff]
      %v219 = vld [vmem:[%s192 + $0xa0] sm:$0xff]
      %v220 = vld [vmem:[%s192 + $0xa8] sm:$0xff]
      %v221 = vld [vmem:[%s192 + $0xb0] sm:$0xff]
      %v222 = vld [vmem:[%s192 + $0xb8] sm:$0xff]
      %v223 = vld [vmem:[%s192 + $0xc0] sm:$0xff]
      %v224 = vld [vmem:[%s192 + $0xc8] sm:$0xff]
      %v225 = vld [vmem:[%s192 + $0xd0] sm:$0xff]
      %v226 = vld [vmem:[%s192 + $0xd8] sm:$0xff]
      %v227 = vld [vmem:[%s192 + $0xe0] sm:$0xff]
      %v228 = vld [vmem:[%s192 + $0xe8] sm:$0xff]
      %v229 = vld [vmem:[%s192 + $0xf0] sm:$0xff]
      %v230 = vld [vmem:[%s192 + $0xf8] sm:$0xff]
      %v231 = vld [vmem:[%s3] sm:$0xff]
      %v232 = vld [vmem:[%s3 + $0x8] sm:$0x1f]
      %233 = vadd.xlane.f32.xlu0 %v199
      %v234 = vpop.xlane.xlu0 %233
      %235 = vadd.xlane.f32.xlu0 %v200
      %v236 = vpop.xlane.xlu0 %235
      %237 = vadd.xlane.f32.xlu0 %v201
      %v238 = vpop.xlane.xlu0 %237
      %239 = vadd.xlane.f32.xlu0 %v202
      %v240 = vpop.xlane.xlu0 %239
      %241 = vadd.xlane.f32.xlu0 %v203
      %v242 = vpop.xlane.xlu0 %241
      %243 = vadd.xlane.f32.xlu0 %v204
      %v244 = vpop.xlane.xlu0 %243
      %245 = vadd.xlane.f32.xlu0 %v205
      %v246 = vpop.xlane.xlu0 %245
      %247 = vadd.xlane.f32.xlu0 %v206
      %v248 = vpop.xlane.xlu0 %247
      %249 = vadd.xlane.f32.xlu0 %v207
      %v250 = vpop.xlane.xlu0 %249
      %251 = vadd.xlane.f32.xlu0 %v208
      %v252 = vpop.xlane.xlu0 %251
      %253 = vadd.xlane.f32.xlu0 %v209
      %v254 = vpop.xlane.xlu0 %253
      %255 = vadd.xlane.f32.xlu0 %v210
      %v256 = vpop.xlane.xlu0 %255
      %257 = vadd.xlane.f32.xlu0 %v211
      %v258 = vpop.xlane.xlu0 %257
      %259 = vadd.xlane.f32.xlu0 %v212
      %v260 = vpop.xlane.xlu0 %259
      %261 = vadd.xlane.f32.xlu0 %v213
      %v262 = vpop.xlane.xlu0 %261
      %263 = vadd.xlane.f32.xlu0 %v214
      %v264 = vpop.xlane.xlu0 %263
      %265 = vadd.xlane.f32.xlu0 %v215
      %v266 = vpop.xlane.xlu0 %265
      %267 = vadd.xlane.f32.xlu0 %v216
      %v268 = vpop.xlane.xlu0 %267
      %269 = vadd.xlane.f32.xlu0 %v217
      %v270 = vpop.xlane.xlu0 %269
      %271 = vadd.xlane.f32.xlu0 %v218
      %v272 = vpop.xlane.xlu0 %271
      %273 = vadd.xlane.f32.xlu0 %v219
      %v274 = vpop.xlane.xlu0 %273
      %275 = vadd.xlane.f32.xlu0 %v220
      %v276 = vpop.xlane.xlu0 %275
      %277 = vadd.xlane.f32.xlu0 %v221
      %v278 = vpop.xlane.xlu0 %277
      %279 = vadd.xlane.f32.xlu0 %v222
      %v280 = vpop.xlane.xlu0 %279
      %281 = vadd.xlane.f32.xlu0 %v223
      %v282 = vpop.xlane.xlu0 %281
      %283 = vadd.xlane.f32.xlu0 %v224
      %v284 = vpop.xlane.xlu0 %283
      %285 = vadd.xlane.f32.xlu0 %v225
      %v286 = vpop.xlane.xlu0 %285
      %287 = vadd.xlane.f32.xlu0 %v226
      %v288 = vpop.xlane.xlu0 %287
      %289 = vadd.xlane.f32.xlu0 %v227
      %v290 = vpop.xlane.xlu0 %289
      %291 = vadd.xlane.f32.xlu0 %v228
      %v292 = vpop.xlane.xlu0 %291
      %293 = vadd.xlane.f32.xlu0 %v229
      %v294 = vpop.xlane.xlu0 %293
      %295 = vadd.xlane.f32.xlu0 %v230
      %v296 = vpop.xlane.xlu0 %295
      %v297 = vmul.f32 %v234, 0.03125
      %v298 = vmul.f32 %v236, 0.03125
      %v299 = vmul.f32 %v238, 0.03125
      %v300 = vmul.f32 %v240, 0.03125
      %v301 = vmul.f32 %v242, 0.03125
      %v302 = vmul.f32 %v244, 0.03125
      %v303 = vmul.f32 %v246, 0.03125
      %v304 = vmul.f32 %v248, 0.03125
      %v305 = vmul.f32 %v250, 0.03125
      %v306 = vmul.f32 %v252, 0.03125
      %v307 = vmul.f32 %v254, 0.03125
      %v308 = vmul.f32 %v256, 0.03125
      %v309 = vmul.f32 %v258, 0.03125
      %v310 = vmul.f32 %v260, 0.03125
      %v311 = vmul.f32 %v262, 0.03125
      %v312 = vmul.f32 %v264, 0.03125
      %v313 = vmul.f32 %v266, 0.03125
      %v314 = vmul.f32 %v268, 0.03125
      %v315 = vmul.f32 %v270, 0.03125
      %v316 = vmul.f32 %v272, 0.03125
      %v317 = vmul.f32 %v274, 0.03125
      %v318 = vmul.f32 %v276, 0.03125
      %v319 = vmul.f32 %v278, 0.03125
      %v320 = vmul.f32 %v280, 0.03125
      %v321 = vmul.f32 %v282, 0.03125
      %v322 = vmul.f32 %v284, 0.03125
      %v323 = vmul.f32 %v286, 0.03125
      %v324 = vmul.f32 %v288, 0.03125
      %v325 = vmul.f32 %v290, 0.03125
      %v326 = vmul.f32 %v292, 0.03125
      %v327 = vmul.f32 %v294, 0.03125
      %v328 = vmul.f32 %v296, 0.03125
      %v329 = vmul.f32 %v199, %v199
      %v330 = vmul.f32 %v200, %v200
      %v331 = vmul.f32 %v201, %v201
      %v332 = vmul.f32 %v202, %v202
      %v333 = vmul.f32 %v203, %v203
      %v334 = vmul.f32 %v204, %v204
      %v335 = vmul.f32 %v205, %v205
      %v336 = vmul.f32 %v206, %v206
      %v337 = vmul.f32 %v207, %v207
      %v338 = vmul.f32 %v208, %v208
      %v339 = vmul.f32 %v209, %v209
      %v340 = vmul.f32 %v210, %v210
      %v341 = vmul.f32 %v211, %v211
      %v342 = vmul.f32 %v212, %v212
      %v343 = vmul.f32 %v213, %v213
      %v344 = vmul.f32 %v214, %v214
      %v345 = vmul.f32 %v215, %v215
      %v346 = vmul.f32 %v216, %v216
      %v347 = vmul.f32 %v217, %v217
      %v348 = vmul.f32 %v218, %v218
      %v349 = vmul.f32 %v219, %v219
      %v350 = vmul.f32 %v220, %v220
      %v351 = vmul.f32 %v221, %v221
      %v352 = vmul.f32 %v222, %v222
      %v353 = vmul.f32 %v223, %v223
      %v354 = vmul.f32 %v224, %v224
      %v355 = vmul.f32 %v225, %v225
      %v356 = vmul.f32 %v226, %v226
      %v357 = vmul.f32 %v227, %v227
      %v358 = vmul.f32 %v228, %v228
      %v359 = vmul.f32 %v229, %v229
      %v360 = vmul.f32 %v230, %v230
      %361 = vadd.xlane.f32.xlu0 %v329
      %v362 = vpop.xlane.xlu0 %361
      %363 = vadd.xlane.f32.xlu0 %v330
      %v364 = vpop.xlane.xlu0 %363
      %365 = vadd.xlane.f32.xlu0 %v331
      %v366 = vpop.xlane.xlu0 %365
      %367 = vadd.xlane.f32.xlu0 %v332
      %v368 = vpop.xlane.xlu0 %367
      %369 = vadd.xlane.f32.xlu0 %v333
      %v370 = vpop.xlane.xlu0 %369
      %371 = vadd.xlane.f32.xlu0 %v334
      %v372 = vpop.xlane.xlu0 %371
      %373 = vadd.xlane.f32.xlu0 %v335
      %v374 = vpop.xlane.xlu0 %373
      %375 = vadd.xlane.f32.xlu0 %v336
      %v376 = vpop.xlane.xlu0 %375
      %377 = vadd.xlane.f32.xlu0 %v337
      %v378 = vpop.xlane.xlu0 %377
      %379 = vadd.xlane.f32.xlu0 %v338
      %v380 = vpop.xlane.xlu0 %379
      %381 = vadd.xlane.f32.xlu0 %v339
      %v382 = vpop.xlane.xlu0 %381
      %383 = vadd.xlane.f32.xlu0 %v340
      %v384 = vpop.xlane.xlu0 %383
      %385 = vadd.xlane.f32.xlu0 %v341
      %v386 = vpop.xlane.xlu0 %385
      %387 = vadd.xlane.f32.xlu0 %v342
      %v388 = vpop.xlane.xlu0 %387
      %389 = vadd.xlane.f32.xlu0 %v343
      %v390 = vpop.xlane.xlu0 %389
      %391 = vadd.xlane.f32.xlu0 %v344
      %v392 = vpop.xlane.xlu0 %391
      %393 = vadd.xlane.f32.xlu0 %v345
      %v394 = vpop.xlane.xlu0 %393
      %395 = vadd.xlane.f32.xlu0 %v346
      %v396 = vpop.xlane.xlu0 %395
      %397 = vadd.xlane.f32.xlu0 %v347
      %v398 = vpop.xlane.xlu0 %397
      %399 = vadd.xlane.f32.xlu0 %v348
      %v400 = vpop.xlane.xlu0 %399
      %401 = vadd.xlane.f32.xlu0 %v349
      %v402 = vpop.xlane.xlu0 %401
      %403 = vadd.xlane.f32.xlu0 %v350
      %v404 = vpop.xlane.xlu0 %403
      %405 = vadd.xlane.f32.xlu0 %v351
      %v406 = vpop.xlane.xlu0 %405
      %407 = vadd.xlane.f32.xlu0 %v352
      %v408 = vpop.xlane.xlu0 %407
      %409 = vadd.xlane.f32.xlu0 %v353
      %v410 = vpop.xlane.xlu0 %409
      %411 = vadd.xlane.f32.xlu0 %v354
      %v412 = vpop.xlane.xlu0 %411
      %413 = vadd.xlane.f32.xlu0 %v355
      %v414 = vpop.xlane.xlu0 %413
      %415 = vadd.xlane.f32.xlu0 %v356
      %v416 = vpop.xlane.xlu0 %415
      %417 = vadd.xlane.f32.xlu0 %v357
      %v418 = vpop.xlane.xlu0 %417
      %419 = vadd.xlane.f32.xlu0 %v358
      %v420 = vpop.xlane.xlu0 %419
      %421 = vadd.xlane.f32.xlu0 %v359
      %v422 = vpop.xlane.xlu0 %421
      %423 = vadd.xlane.f32.xlu0 %v360
      %v424 = vpop.xlane.xlu0 %423
      %v425 = vmul.f32 %v362, 0.03125
      %v426 = vmul.f32 %v364, 0.03125
      %v427 = vmul.f32 %v366, 0.03125
      %v428 = vmul.f32 %v368, 0.03125
      %v429 = vmul.f32 %v370, 0.03125
      %v430 = vmul.f32 %v372, 0.03125
      %v431 = vmul.f32 %v374, 0.03125
      %v432 = vmul.f32 %v376, 0.03125
      %v433 = vmul.f32 %v378, 0.03125
      %v434 = vmul.f32 %v380, 0.03125
      %v435 = vmul.f32 %v382, 0.03125
      %v436 = vmul.f32 %v384, 0.03125
      %v437 = vmul.f32 %v386, 0.03125
      %v438 = vmul.f32 %v388, 0.03125
      %v439 = vmul.f32 %v390, 0.03125
      %v440 = vmul.f32 %v392, 0.03125
      %v441 = vmul.f32 %v394, 0.03125
      %v442 = vmul.f32 %v396, 0.03125
      %v443 = vmul.f32 %v398, 0.03125
      %v444 = vmul.f32 %v400, 0.03125
      %v445 = vmul.f32 %v402, 0.03125
      %v446 = vmul.f32 %v404, 0.03125
      %v447 = vmul.f32 %v406, 0.03125
      %v448 = vmul.f32 %v408, 0.03125
      %v449 = vmul.f32 %v410, 0.03125
      %v450 = vmul.f32 %v412, 0.03125
      %v451 = vmul.f32 %v414, 0.03125
      %v452 = vmul.f32 %v416, 0.03125
      %v453 = vmul.f32 %v418, 0.03125
      %v454 = vmul.f32 %v420, 0.03125
      %v455 = vmul.f32 %v422, 0.03125
      %v456 = vmul.f32 %v424, 0.03125
      %v457 = vmul.f32 %v297, %v297
      %v458 = vmul.f32 %v298, %v298
      %v459 = vmul.f32 %v299, %v299
      %v460 = vmul.f32 %v300, %v300
      %v461 = vmul.f32 %v301, %v301
      %v462 = vmul.f32 %v302, %v302
      %v463 = vmul.f32 %v303, %v303
      %v464 = vmul.f32 %v304, %v304
      %v465 = vmul.f32 %v305, %v305
      %v466 = vmul.f32 %v306, %v306
      %v467 = vmul.f32 %v307, %v307
      %v468 = vmul.f32 %v308, %v308
      %v469 = vmul.f32 %v309, %v309
      %v470 = vmul.f32 %v310, %v310
      %v471 = vmul.f32 %v311, %v311
      %v472 = vmul.f32 %v312, %v312
      %v473 = vmul.f32 %v313, %v313
      %v474 = vmul.f32 %v314, %v314
      %v475 = vmul.f32 %v315, %v315
      %v476 = vmul.f32 %v316, %v316
      %v477 = vmul.f32 %v317, %v317
      %v478 = vmul.f32 %v318, %v318
      %v479 = vmul.f32 %v319, %v319
      %v480 = vmul.f32 %v320, %v320
      %v481 = vmul.f32 %v321, %v321
      %v482 = vmul.f32 %v322, %v322
      %v483 = vmul.f32 %v323, %v323
      %v484 = vmul.f32 %v324, %v324
      %v485 = vmul.f32 %v325, %v325
      %v486 = vmul.f32 %v326, %v326
      %v487 = vmul.f32 %v327, %v327
      %v488 = vmul.f32 %v328, %v328
      %v489 = vsub.f32 %v425, %v457
      %v490 = vsub.f32 %v426, %v458
      %v491 = vsub.f32 %v427, %v459
      %v492 = vsub.f32 %v428, %v460
      %v493 = vsub.f32 %v429, %v461
      %v494 = vsub.f32 %v430, %v462
      %v495 = vsub.f32 %v431, %v463
      %v496 = vsub.f32 %v432, %v464
      %v497 = vsub.f32 %v433, %v465
      %v498 = vsub.f32 %v434, %v466
      %v499 = vsub.f32 %v435, %v467
      %v500 = vsub.f32 %v436, %v468
      %v501 = vsub.f32 %v437, %v469
      %v502 = vsub.f32 %v438, %v470
      %v503 = vsub.f32 %v439, %v471
      %v504 = vsub.f32 %v440, %v472
      %v505 = vsub.f32 %v441, %v473
      %v506 = vsub.f32 %v442, %v474
      %v507 = vsub.f32 %v443, %v475
      %v508 = vsub.f32 %v444, %v476
      %v509 = vsub.f32 %v445, %v477
      %v510 = vsub.f32 %v446, %v478
      %v511 = vsub.f32 %v447, %v479
      %v512 = vsub.f32 %v448, %v480
      %v513 = vsub.f32 %v449, %v481
      %v514 = vsub.f32 %v450, %v482
      %v515 = vsub.f32 %v451, %v483
      %v516 = vsub.f32 %v452, %v484
      %v517 = vsub.f32 %v453, %v485
      %v518 = vsub.f32 %v454, %v486
      %v519 = vsub.f32 %v455, %v487
      %v520 = vsub.f32 %v456, %v488
      %v521 = vsub.f32 %v199, %v297
      %v522 = vsub.f32 %v200, %v298
      %v523 = vsub.f32 %v201, %v299
      %v524 = vsub.f32 %v202, %v300
      %v525 = vsub.f32 %v203, %v301
      %v526 = vsub.f32 %v204, %v302
      %v527 = vsub.f32 %v205, %v303
      %v528 = vsub.f32 %v206, %v304
      %v529 = vsub.f32 %v207, %v305
      %v530 = vsub.f32 %v208, %v306
      %v531 = vsub.f32 %v209, %v307
      %v532 = vsub.f32 %v210, %v308
      %v533 = vsub.f32 %v211, %v309
      %v534 = vsub.f32 %v212, %v310
      %v535 = vsub.f32 %v213, %v311
      %v536 = vsub.f32 %v214, %v312
      %v537 = vsub.f32 %v215, %v313
      %v538 = vsub.f32 %v216, %v314
      %v539 = vsub.f32 %v217, %v315
      %v540 = vsub.f32 %v218, %v316
      %v541 = vsub.f32 %v219, %v317
      %v542 = vsub.f32 %v220, %v318
      %v543 = vsub.f32 %v221, %v319
      %v544 = vsub.f32 %v222, %v320
      %v545 = vsub.f32 %v223, %v321
      %v546 = vsub.f32 %v224, %v322
      %v547 = vsub.f32 %v225, %v323
      %v548 = vsub.f32 %v226, %v324
      %v549 = vsub.f32 %v227, %v325
      %v550 = vsub.f32 %v228, %v326
      %v551 = vsub.f32 %v229, %v327
      %v552 = vsub.f32 %v230, %v328
      %v553 = vadd.f32 %v489, 1e-05
      %v554 = vadd.f32 %v490, 1e-05
      %v555 = vadd.f32 %v491, 1e-05
      %v556 = vadd.f32 %v492, 1e-05
      %v557 = vadd.f32 %v493, 1e-05
      %v558 = vadd.f32 %v494, 1e-05
      %v559 = vadd.f32 %v495, 1e-05
      %v560 = vadd.f32 %v496, 1e-05
      %v561 = vadd.f32 %v497, 1e-05
      %v562 = vadd.f32 %v498, 1e-05
      %v563 = vadd.f32 %v499, 1e-05
      %v564 = vadd.f32 %v500, 1e-05
      %v565 = vadd.f32 %v501, 1e-05
      %v566 = vadd.f32 %v502, 1e-05
      %v567 = vadd.f32 %v503, 1e-05
      %v568 = vadd.f32 %v504, 1e-05
      %v569 = vadd.f32 %v505, 1e-05
      %v570 = vadd.f32 %v506, 1e-05
      %v571 = vadd.f32 %v507, 1e-05
      %v572 = vadd.f32 %v508, 1e-05
      %v573 = vadd.f32 %v509, 1e-05
      %v574 = vadd.f32 %v510, 1e-05
      %v575 = vadd.f32 %v511, 1e-05
      %v576 = vadd.f32 %v512, 1e-05
      %v577 = vadd.f32 %v513, 1e-05
      %v578 = vadd.f32 %v514, 1e-05
      %v579 = vadd.f32 %v515, 1e-05
      %v580 = vadd.f32 %v516, 1e-05
      %v581 = vadd.f32 %v517, 1e-05
      %v582 = vadd.f32 %v518, 1e-05
      %v583 = vadd.f32 %v519, 1e-05
      %v584 = vadd.f32 %v520, 1e-05
      %v585 = vrsqrt.pop %v553
      %v586 = vrsqrt.pop %v554
      %v587 = vrsqrt.pop %v555
      %v588 = vrsqrt.pop %v556
      %v589 = vrsqrt.pop %v557
      %v590 = vrsqrt.pop %v558
      %v591 = vrsqrt.pop %v559
      %v592 = vrsqrt.pop %v560
      %v593 = vrsqrt.pop %v561
      %v594 = vrsqrt.pop %v562
      %v595 = vrsqrt.pop %v563
      %v596 = vrsqrt.pop %v564
      %v597 = vrsqrt.pop %v565
      %v598 = vrsqrt.pop %v566
      %v599 = vrsqrt.pop %v567
      %v600 = vrsqrt.pop %v568
      %v601 = vrsqrt.pop %v569
      %v602 = vrsqrt.pop %v570
      %v603 = vrsqrt.pop %v571
      %v604 = vrsqrt.pop %v572
      %v605 = vrsqrt.pop %v573
      %v606 = vrsqrt.pop %v574
      %v607 = vrsqrt.pop %v575
      %v608 = vrsqrt.pop %v576
      %v609 = vrsqrt.pop %v577
      %v610 = vrsqrt.pop %v578
      %v611 = vrsqrt.pop %v579
      %v612 = vrsqrt.pop %v580
      %v613 = vrsqrt.pop %v581
      %v614 = vrsqrt.pop %v582
      %v615 = vrsqrt.pop %v583
      %v616 = vrsqrt.pop %v584
      %v617 = vmul.f32 %v521, %v585
      %v618 = vmul.f32 %v522, %v586
      %v619 = vmul.f32 %v523, %v587
      %v620 = vmul.f32 %v524, %v588
      %v621 = vmul.f32 %v525, %v589
      %v622 = vmul.f32 %v526, %v590
      %v623 = vmul.f32 %v527, %v591
      %v624 = vmul.f32 %v528, %v592
      %v625 = vmul.f32 %v529, %v593
      %v626 = vmul.f32 %v530, %v594
      %v627 = vmul.f32 %v531, %v595
      %v628 = vmul.f32 %v532, %v596
      %v629 = vmul.f32 %v533, %v597
      %v630 = vmul.f32 %v534, %v598
      %v631 = vmul.f32 %v535, %v599
      %v632 = vmul.f32 %v536, %v600
      %v633 = vmul.f32 %v537, %v601
      %v634 = vmul.f32 %v538, %v602
      %v635 = vmul.f32 %v539, %v603
      %v636 = vmul.f32 %v540, %v604
      %v637 = vmul.f32 %v541, %v605
      %v638 = vmul.f32 %v542, %v606
      %v639 = vmul.f32 %v543, %v607
      %v640 = vmul.f32 %v544, %v608
      %v641 = vmul.f32 %v545, %v609
      %v642 = vmul.f32 %v546, %v610
      %v643 = vmul.f32 %v547, %v611
      %v644 = vmul.f32 %v548, %v612
      %v645 = vmul.f32 %v549, %v613
      %v646 = vmul.f32 %v550, %v614
      %v647 = vmul.f32 %v551, %v615
      %v648 = vmul.f32 %v552, %v616
      %v649 = vpack.c.bf16 %v618, %v617
      %v650 = vpack.c.bf16 %v620, %v619
      %v651 = vpack.c.bf16 %v622, %v621
      %v652 = vpack.c.bf16 %v624, %v623
      %v653 = vpack.c.bf16 %v626, %v625
      %v654 = vpack.c.bf16 %v628, %v627
      %v655 = vpack.c.bf16 %v630, %v629
      %v656 = vpack.c.bf16 %v632, %v631
      %v657 = vpack.c.bf16 %v634, %v633
      %v658 = vpack.c.bf16 %v636, %v635
      %v659 = vpack.c.bf16 %v638, %v637
      %v660 = vpack.c.bf16 %v640, %v639
      %v661 = vpack.c.bf16 %v642, %v641
      %v662 = vpack.c.bf16 %v644, %v643
      %v663 = vpack.c.bf16 %v646, %v645
      %v664 = vpack.c.bf16 %v648, %v647
      %v665 = vld [vmem:[%s1] sm:$0xff]
      %v666 = vld [vmem:[%s1 + $0x8] sm:$0xff]
      %v667 = vld [vmem:[%s1 + $0x10] sm:$0xff]
      %v668 = vld [vmem:[%s1 + $0x18] sm:$0xff]
      %v669 = vld [vmem:[%s1 + $0x20] sm:$0xff]
      %v670 = vld [vmem:[%s1 + $0x28] sm:$0xff]
      %v671 = vld [vmem:[%s1 + $0x30] sm:$0xff]
      %v672 = vld [vmem:[%s1 + $0x38] sm:$0xff]
      %v673 = vld [vmem:[%s1 + $0x40] sm:$0xff]
      %v674 = vld [vmem:[%s1 + $0x48] sm:$0xff]
      %v675 = vld [vmem:[%s1 + $0x50] sm:$0xff]
      %v676 = vld [vmem:[%s1 + $0x58] sm:$0xff]
      %v677 = vld [vmem:[%s1 + $0x60] sm:$0xff]
      %v678 = vld [vmem:[%s1 + $0x68] sm:$0xff]
      %v679 = vld [vmem:[%s1 + $0x70] sm:$0xff]
      %v680 = vld [vmem:[%s1 + $0x78] sm:$0xff]
      %v697 = vunpack.c.l.b16 %v665
      %v698 = vunpack.c.h.b16 %v665
      %v699 = vunpack.c.l.b16 %v666
      %v700 = vunpack.c.h.b16 %v666
      %v701 = vunpack.c.l.b16 %v667
      %v702 = vunpack.c.h.b16 %v667
      %v703 = vunpack.c.l.b16 %v668
      %v704 = vunpack.c.h.b16 %v668
      %v705 = vunpack.c.l.b16 %v669
      %v706 = vunpack.c.h.b16 %v669
      %v707 = vunpack.c.l.b16 %v670
      %v708 = vunpack.c.h.b16 %v670
      %v709 = vunpack.c.l.b16 %v671
      %v710 = vunpack.c.h.b16 %v671
      %v711 = vunpack.c.l.b16 %v672
      %v712 = vunpack.c.h.b16 %v672
      %v713 = vunpack.c.l.b16 %v673
      %v714 = vunpack.c.h.b16 %v673
      %v715 = vunpack.c.l.b16 %v674
      %v716 = vunpack.c.h.b16 %v674
      %v717 = vunpack.c.l.b16 %v675
      %v718 = vunpack.c.h.b16 %v675
      %v719 = vunpack.c.l.b16 %v676
      %v720 = vunpack.c.h.b16 %v676
      %v721 = vunpack.c.l.b16 %v677
      %v722 = vunpack.c.h.b16 %v677
      %v723 = vunpack.c.l.b16 %v678
      %v724 = vunpack.c.h.b16 %v678
      %v725 = vunpack.c.l.b16 %v679
      %v726 = vunpack.c.h.b16 %v679
      %v727 = vunpack.c.l.b16 %v680
      %v728 = vunpack.c.h.b16 %v680
      %v729 = vpack.c.b16 %v699, %v697
      %v730 = vpack.c.b16 %v700, %v698
      %v731 = vpack.c.b16 %v703, %v701
      %v732 = vpack.c.b16 %v704, %v702
      %v733 = vpack.c.b16 %v707, %v705
      %v734 = vpack.c.b16 %v708, %v706
      %v735 = vpack.c.b16 %v711, %v709
      %v736 = vpack.c.b16 %v712, %v710
      %v737 = vpack.c.b16 %v715, %v713
      %v738 = vpack.c.b16 %v716, %v714
      %v739 = vpack.c.b16 %v719, %v717
      %v740 = vpack.c.b16 %v720, %v718
      %v741 = vpack.c.b16 %v723, %v721
      %v742 = vpack.c.b16 %v724, %v722
      %v743 = vpack.c.b16 %v727, %v725
      %v744 = vpack.c.b16 %v728, %v726
      %761 = vmatprep.subr.bf16.mxu0 %v744
      %762 = vmatpush1.bf16.msra.mxu0 %v743
      %763 = vmatprep.subr.bf16.mxu0 %v742
      %764 = vmatpush1.bf16.msra.mxu0 %v741
      %765 = vmatprep.subr.bf16.mxu0 %v740
      %766 = vmatpush1.bf16.msra.mxu0 %v739
      %767 = vmatprep.subr.bf16.mxu0 %v738
      %768 = vmatpush1.bf16.msra.mxu0 %v737
      %769 = vmatprep.subr.bf16.mxu0 %v736
      %770 = vmatpush1.bf16.msra.mxu0 %v735
      %771 = vmatprep.subr.bf16.mxu0 %v734
      %772 = vmatpush1.bf16.msra.mxu0 %v733
      %773 = vmatprep.subr.bf16.mxu0 %v732
      %774 = vmatpush1.bf16.msra.mxu0 %v731
      %775 = vmatprep.subr.bf16.mxu0 %v730
      %776 = vmatpush1.bf16.msra.mxu0 %v729
      %777 = vmatprep.subr.bf16.mxu0 0
      %778 = vmatpush2.bf16.msra.mxu0 0
      %779 = vmatprep.subr.bf16.mxu0 0
      %780 = vmatpush2.bf16.msra.mxu0 0
      %781 = vmatprep.subr.bf16.mxu0 0
      %782 = vmatpush2.bf16.msra.mxu0 0
      %783 = vmatprep.subr.bf16.mxu0 0
      %784 = vmatpush2.bf16.msra.mxu0 0
      %785 = vmatprep.subr.bf16.mxu0 0
      %786 = vmatpush2.bf16.msra.mxu0 0
      %787 = vmatprep.subr.bf16.mxu0 0
      %788 = vmatpush2.bf16.msra.mxu0 0
      %789 = vmatprep.subr.bf16.mxu0 0
      %790 = vmatpush2.bf16.msra.mxu0 0
      %791 = vmatprep.subr.bf16.mxu0 0
      %792 = vmatpush2.bf16.msra.mxu0 0
      %793 = vmatprep.mubr.bf16.mxu0 0
      %794 = vmatmul.mubr.bf16.gmra.mxu0 %v649
      %v795 = vpop.f32.mrf.mxu0
      %v796 = vadd.f32 0.0, %v795
      %v797 = vpop.f32.mrf.mxu0
      %v798 = vadd.f32 0.0, %v797
      %v799 = vpop.f32.mrf.mxu0
      %v800 = vadd.f32 0.0, %v799
      %v801 = vpop.f32.mrf.mxu0
      %v802 = vadd.f32 0.0, %v801
      %803 = vmatprep.mubr.bf16.mxu0 0
      %804 = vmatmul.mubr.bf16.gmra.mxu0 %v650
      %v805 = vpop.f32.mrf.mxu0
      %v806 = vadd.f32 0.0, %v805
      %v807 = vpop.f32.mrf.mxu0
      %v808 = vadd.f32 0.0, %v807
      %v809 = vpop.f32.mrf.mxu0
      %v810 = vadd.f32 0.0, %v809
      %v811 = vpop.f32.mrf.mxu0
      %v812 = vadd.f32 0.0, %v811
      %813 = vmatprep.mubr.bf16.mxu0 0
      %814 = vmatmul.mubr.bf16.gmra.mxu0 %v651
      %v815 = vpop.f32.mrf.mxu0
      %v816 = vadd.f32 0.0, %v815
      %v817 = vpop.f32.mrf.mxu0
      %v818 = vadd.f32 0.0, %v817
      %v819 = vpop.f32.mrf.mxu0
      %v820 = vadd.f32 0.0, %v819
      %v821 = vpop.f32.mrf.mxu0
      %v822 = vadd.f32 0.0, %v821
      %823 = vmatprep.mubr.bf16.mxu0 0
      %824 = vmatmul.mubr.bf16.gmra.mxu0 %v652
      %v825 = vpop.f32.mrf.mxu0
      %v826 = vadd.f32 0.0, %v825
      %v827 = vpop.f32.mrf.mxu0
      %v828 = vadd.f32 0.0, %v827
      %v829 = vpop.f32.mrf.mxu0
      %v830 = vadd.f32 0.0, %v829
      %v831 = vpop.f32.mrf.mxu0
      %v832 = vadd.f32 0.0, %v831
      %833 = vmatprep.mubr.bf16.mxu0 0
      %834 = vmatmul.mubr.bf16.gmra.mxu0 %v653
      %v835 = vpop.f32.mrf.mxu0
      %v836 = vadd.f32 0.0, %v835
      %v837 = vpop.f32.mrf.mxu0
      %v838 = vadd.f32 0.0, %v837
      %v839 = vpop.f32.mrf.mxu0
      %v840 = vadd.f32 0.0, %v839
      %v841 = vpop.f32.mrf.mxu0
      %v842 = vadd.f32 0.0, %v841
      %843 = vmatprep.mubr.bf16.mxu0 0
      %844 = vmatmul.mubr.bf16.gmra.mxu0 %v654
      %v845 = vpop.f32.mrf.mxu0
      %v846 = vadd.f32 0.0, %v845
      %v847 = vpop.f32.mrf.mxu0
      %v848 = vadd.f32 0.0, %v847
      %v849 = vpop.f32.mrf.mxu0
      %v850 = vadd.f32 0.0, %v849
      %v851 = vpop.f32.mrf.mxu0
      %v852 = vadd.f32 0.0, %v851
      %853 = vmatprep.mubr.bf16.mxu0 0
      %854 = vmatmul.mubr.bf16.gmra.mxu0 %v655
      %v855 = vpop.f32.mrf.mxu0
      %v856 = vadd.f32 0.0, %v855
      %v857 = vpop.f32.mrf.mxu0
      %v858 = vadd.f32 0.0, %v857
      %v859 = vpop.f32.mrf.mxu0
      %v860 = vadd.f32 0.0, %v859
      %v861 = vpop.f32.mrf.mxu0
      %v862 = vadd.f32 0.0, %v861
      %863 = vmatprep.mubr.bf16.mxu0 0
      %864 = vmatmul.mubr.bf16.gmra.mxu0 %v656
      %v865 = vpop.f32.mrf.mxu0
      %v866 = vadd.f32 0.0, %v865
      %v867 = vpop.f32.mrf.mxu0
      %v868 = vadd.f32 0.0, %v867
      %v869 = vpop.f32.mrf.mxu0
      %v870 = vadd.f32 0.0, %v869
      %v871 = vpop.f32.mrf.mxu0
      %v872 = vadd.f32 0.0, %v871
      %873 = vmatprep.mubr.bf16.mxu0 0
      %874 = vmatmul.mubr.bf16.gmra.mxu0 %v657
      %v875 = vpop.f32.mrf.mxu0
      %v876 = vadd.f32 0.0, %v875
      %v877 = vpop.f32.mrf.mxu0
      %v878 = vadd.f32 0.0, %v877
      %v879 = vpop.f32.mrf.mxu0
      %v880 = vadd.f32 0.0, %v879
      %v881 = vpop.f32.mrf.mxu0
      %v882 = vadd.f32 0.0, %v881
      %883 = vmatprep.mubr.bf16.mxu0 0
      %884 = vmatmul.mubr.bf16.gmra.mxu0 %v658
      %v885 = vpop.f32.mrf.mxu0
      %v886 = vadd.f32 0.0, %v885
      %v887 = vpop.f32.mrf.mxu0
      %v888 = vadd.f32 0.0, %v887
      %v889 = vpop.f32.mrf.mxu0
      %v890 = vadd.f32 0.0, %v889
      %v891 = vpop.f32.mrf.mxu0
      %v892 = vadd.f32 0.0, %v891
      %893 = vmatprep.mubr.bf16.mxu0 0
      %894 = vmatmul.mubr.bf16.gmra.mxu0 %v659
      %v895 = vpop.f32.mrf.mxu0
      %v896 = vadd.f32 0.0, %v895
      %v897 = vpop.f32.mrf.mxu0
      %v898 = vadd.f32 0.0, %v897
      %v899 = vpop.f32.mrf.mxu0
      %v900 = vadd.f32 0.0, %v899
      %v901 = vpop.f32.mrf.mxu0
      %v902 = vadd.f32 0.0, %v901
      %903 = vmatprep.mubr.bf16.mxu0 0
      %904 = vmatmul.mubr.bf16.gmra.mxu0 %v660
      %v905 = vpop.f32.mrf.mxu0
      %v906 = vadd.f32 0.0, %v905
      %v907 = vpop.f32.mrf.mxu0
      %v908 = vadd.f32 0.0, %v907
      %v909 = vpop.f32.mrf.mxu0
      %v910 = vadd.f32 0.0, %v909
      %v911 = vpop.f32.mrf.mxu0
      %v912 = vadd.f32 0.0, %v911
      %913 = vmatprep.mubr.bf16.mxu0 0
      %914 = vmatmul.mubr.bf16.gmra.mxu0 %v661
      %v915 = vpop.f32.mrf.mxu0
      %v916 = vadd.f32 0.0, %v915
      %v917 = vpop.f32.mrf.mxu0
      %v918 = vadd.f32 0.0, %v917
      %v919 = vpop.f32.mrf.mxu0
      %v920 = vadd.f32 0.0, %v919
      %v921 = vpop.f32.mrf.mxu0
      %v922 = vadd.f32 0.0, %v921
      %923 = vmatprep.mubr.bf16.mxu0 0
      %924 = vmatmul.mubr.bf16.gmra.mxu0 %v662
      %v925 = vpop.f32.mrf.mxu0
      %v926 = vadd.f32 0.0, %v925
      %v927 = vpop.f32.mrf.mxu0
      %v928 = vadd.f32 0.0, %v927
      %v929 = vpop.f32.mrf.mxu0
      %v930 = vadd.f32 0.0, %v929
      %v931 = vpop.f32.mrf.mxu0
      %v932 = vadd.f32 0.0, %v931
      %933 = vmatprep.mubr.bf16.mxu0 0
      %934 = vmatmul.mubr.bf16.gmra.mxu0 %v663
      %v935 = vpop.f32.mrf.mxu0
      %v936 = vadd.f32 0.0, %v935
      %v937 = vpop.f32.mrf.mxu0
      %v938 = vadd.f32 0.0, %v937
      %v939 = vpop.f32.mrf.mxu0
      %v940 = vadd.f32 0.0, %v939
      %v941 = vpop.f32.mrf.mxu0
      %v942 = vadd.f32 0.0, %v941
      %943 = vmatprep.mubr.bf16.mxu0 0
      %944 = vmatmul.mubr.bf16.gmra.mxu0 %v664
      %v945 = vpop.f32.mrf.mxu0
      %v946 = vadd.f32 0.0, %v945
      %v947 = vpop.f32.mrf.mxu0
      %v948 = vadd.f32 0.0, %v947
      %v949 = vpop.f32.mrf.mxu0
      %v950 = vadd.f32 0.0, %v949
      %v951 = vpop.f32.mrf.mxu0
      %v952 = vadd.f32 0.0, %v951
      %953 = vdwg.mxu0
      %v954 = vlaneseq
      %v955 = vshrl.u32 %v954, 7
      %v956 = vsub.s32 3, %v955
      %v957 = vrot.slane %v232, %v956
      %v958 = vadd.f32 %v796, %v957
      %v959 = vadd.f32 %v800, %v957
      %v960 = vadd.f32 %v806, %v957
      %v961 = vadd.f32 %v810, %v957
      %v962 = vadd.f32 %v816, %v957
      %v963 = vadd.f32 %v820, %v957
      %v964 = vadd.f32 %v826, %v957
      %v965 = vadd.f32 %v830, %v957
      %v966 = vadd.f32 %v836, %v957
      %v967 = vadd.f32 %v840, %v957
      %v968 = vadd.f32 %v846, %v957
      %v969 = vadd.f32 %v850, %v957
      %v970 = vadd.f32 %v856, %v957
      %v971 = vadd.f32 %v860, %v957
      %v972 = vadd.f32 %v866, %v957
      %v973 = vadd.f32 %v870, %v957
      %v974 = vadd.f32 %v876, %v957
      %v975 = vadd.f32 %v880, %v957
      %v976 = vadd.f32 %v886, %v957
      %v977 = vadd.f32 %v890, %v957
      %v978 = vadd.f32 %v896, %v957
      %v979 = vadd.f32 %v900, %v957
      %v980 = vadd.f32 %v906, %v957
      %v981 = vadd.f32 %v910, %v957
      %v982 = vadd.f32 %v916, %v957
      %v983 = vadd.f32 %v920, %v957
      %v984 = vadd.f32 %v926, %v957
      %v985 = vadd.f32 %v930, %v957
      %v986 = vadd.f32 %v936, %v957
      %v987 = vadd.f32 %v940, %v957
      %v988 = vadd.f32 %v946, %v957
      %v989 = vadd.f32 %v950, %v957
      %v990 = vlaneseq
      %v991 = vshrl.u32 %v990, 7
      %v992 = vsub.s32 4, %v991
      %v993 = vrot.slane %v232, %v992
      %v994 = vadd.f32 %v798, %v993
      %v995 = vadd.f32 %v802, %v993
      %v996 = vadd.f32 %v808, %v993
      %v997 = vadd.f32 %v812, %v993
      %v998 = vadd.f32 %v818, %v993
      %v999 = vadd.f32 %v822, %v993
      %v1000 = vadd.f32 %v828, %v993
      %v1001 = vadd.f32 %v832, %v993
      %v1002 = vadd.f32 %v838, %v993
      %v1003 = vadd.f32 %v842, %v993
      %v1004 = vadd.f32 %v848, %v993
      %v1005 = vadd.f32 %v852, %v993
      %v1006 = vadd.f32 %v858, %v993
      %v1007 = vadd.f32 %v862, %v993
      %v1008 = vadd.f32 %v868, %v993
      %v1009 = vadd.f32 %v872, %v993
      %v1010 = vadd.f32 %v878, %v993
      %v1011 = vadd.f32 %v882, %v993
      %v1012 = vadd.f32 %v888, %v993
      %v1013 = vadd.f32 %v892, %v993
      %v1014 = vadd.f32 %v898, %v993
      %v1015 = vadd.f32 %v902, %v993
      %v1016 = vadd.f32 %v908, %v993
      %v1017 = vadd.f32 %v912, %v993
      %v1018 = vadd.f32 %v918, %v993
      %v1019 = vadd.f32 %v922, %v993
      %v1020 = vadd.f32 %v928, %v993
      %v1021 = vadd.f32 %v932, %v993
      %v1022 = vadd.f32 %v938, %v993
      %v1023 = vadd.f32 %v942, %v993
      %v1024 = vadd.f32 %v948, %v993
      %v1025 = vadd.f32 %v952, %v993
      %v1026 = vxor.u32 %v994, 2147483648
      %v1027 = vxor.u32 %v995, 2147483648
      %v1028 = vxor.u32 %v996, 2147483648
      %v1029 = vxor.u32 %v997, 2147483648
      %v1030 = vxor.u32 %v998, 2147483648
      %v1031 = vxor.u32 %v999, 2147483648
      %v1032 = vxor.u32 %v1000, 2147483648
      %v1033 = vxor.u32 %v1001, 2147483648
      %v1034 = vxor.u32 %v1002, 2147483648
      %v1035 = vxor.u32 %v1003, 2147483648
      %v1036 = vxor.u32 %v1004, 2147483648
      %v1037 = vxor.u32 %v1005, 2147483648
      %v1038 = vxor.u32 %v1006, 2147483648
      %v1039 = vxor.u32 %v1007, 2147483648
      %v1040 = vxor.u32 %v1008, 2147483648
      %v1041 = vxor.u32 %v1009, 2147483648
      %v1042 = vxor.u32 %v1010, 2147483648
      %v1043 = vxor.u32 %v1011, 2147483648
      %v1044 = vxor.u32 %v1012, 2147483648
      %v1045 = vxor.u32 %v1013, 2147483648
      %v1046 = vxor.u32 %v1014, 2147483648
      %v1047 = vxor.u32 %v1015, 2147483648
      %v1048 = vxor.u32 %v1016, 2147483648
      %v1049 = vxor.u32 %v1017, 2147483648
      %v1050 = vxor.u32 %v1018, 2147483648
      %v1051 = vxor.u32 %v1019, 2147483648
      %v1052 = vxor.u32 %v1020, 2147483648
      %v1053 = vxor.u32 %v1021, 2147483648
      %v1054 = vxor.u32 %v1022, 2147483648
      %v1055 = vxor.u32 %v1023, 2147483648
      %v1056 = vxor.u32 %v1024, 2147483648
      %v1057 = vxor.u32 %v1025, 2147483648
      %v1058 = vmul.f32 %v1026, 1.442695
      %v1059 = vpow.pop %v1058
      %v1060 = vmul.f32 %v1027, 1.442695
      %v1061 = vpow.pop %v1060
      %v1062 = vmul.f32 %v1028, 1.442695
      %v1063 = vpow.pop %v1062
      %v1064 = vmul.f32 %v1029, 1.442695
      %v1065 = vpow.pop %v1064
      %v1066 = vmul.f32 %v1030, 1.442695
      %v1067 = vpow.pop %v1066
      %v1068 = vmul.f32 %v1031, 1.442695
      %v1069 = vpow.pop %v1068
      %v1070 = vmul.f32 %v1032, 1.442695
      %v1071 = vpow.pop %v1070
      %v1072 = vmul.f32 %v1033, 1.442695
      %v1073 = vpow.pop %v1072
      %v1074 = vmul.f32 %v1034, 1.442695
      %v1075 = vpow.pop %v1074
      %v1076 = vmul.f32 %v1035, 1.442695
      %v1077 = vpow.pop %v1076
      %v1078 = vmul.f32 %v1036, 1.442695
      %v1079 = vpow.pop %v1078
      %v1080 = vmul.f32 %v1037, 1.442695
      %v1081 = vpow.pop %v1080
      %v1082 = vmul.f32 %v1038, 1.442695
      %v1083 = vpow.pop %v1082
      %v1084 = vmul.f32 %v1039, 1.442695
      %v1085 = vpow.pop %v1084
      %v1086 = vmul.f32 %v1040, 1.442695
      %v1087 = vpow.pop %v1086
      %v1088 = vmul.f32 %v1041, 1.442695
      %v1089 = vpow.pop %v1088
      %v1090 = vmul.f32 %v1042, 1.442695
      %v1091 = vpow.pop %v1090
      %v1092 = vmul.f32 %v1043, 1.442695
      %v1093 = vpow.pop %v1092
      %v1094 = vmul.f32 %v1044, 1.442695
      %v1095 = vpow.pop %v1094
      %v1096 = vmul.f32 %v1045, 1.442695
      %v1097 = vpow.pop %v1096
      %v1098 = vmul.f32 %v1046, 1.442695
      %v1099 = vpow.pop %v1098
      %v1100 = vmul.f32 %v1047, 1.442695
      %v1101 = vpow.pop %v1100
      %v1102 = vmul.f32 %v1048, 1.442695
      %v1103 = vpow.pop %v1102
      %v1104 = vmul.f32 %v1049, 1.442695
      %v1105 = vpow.pop %v1104
      %v1106 = vmul.f32 %v1050, 1.442695
      %v1107 = vpow.pop %v1106
      %v1108 = vmul.f32 %v1051, 1.442695
      %v1109 = vpow.pop %v1108
      %v1110 = vmul.f32 %v1052, 1.442695
      %v1111 = vpow.pop %v1110
      %v1112 = vmul.f32 %v1053, 1.442695
      %v1113 = vpow.pop %v1112
      %v1114 = vmul.f32 %v1054, 1.442695
      %v1115 = vpow.pop %v1114
      %v1116 = vmul.f32 %v1055, 1.442695
      %v1117 = vpow.pop %v1116
      %v1118 = vmul.f32 %v1056, 1.442695
      %v1119 = vpow.pop %v1118
      %v1120 = vmul.f32 %v1057, 1.442695
      %v1121 = vpow.pop %v1120
      %v1122 = vadd.f32 %v1059, 1.0
      %v1123 = vadd.f32 %v1061, 1.0
      %v1124 = vadd.f32 %v1063, 1.0
      %v1125 = vadd.f32 %v1065, 1.0
      %v1126 = vadd.f32 %v1067, 1.0
      %v1127 = vadd.f32 %v1069, 1.0
      %v1128 = vadd.f32 %v1071, 1.0
      %v1129 = vadd.f32 %v1073, 1.0
      %v1130 = vadd.f32 %v1075, 1.0
      %v1131 = vadd.f32 %v1077, 1.0
      %v1132 = vadd.f32 %v1079, 1.0
      %v1133 = vadd.f32 %v1081, 1.0
      %v1134 = vadd.f32 %v1083, 1.0
      %v1135 = vadd.f32 %v1085, 1.0
      %v1136 = vadd.f32 %v1087, 1.0
      %v1137 = vadd.f32 %v1089, 1.0
      %v1138 = vadd.f32 %v1091, 1.0
      %v1139 = vadd.f32 %v1093, 1.0
      %v1140 = vadd.f32 %v1095, 1.0
      %v1141 = vadd.f32 %v1097, 1.0
      %v1142 = vadd.f32 %v1099, 1.0
      %v1143 = vadd.f32 %v1101, 1.0
      %v1144 = vadd.f32 %v1103, 1.0
      %v1145 = vadd.f32 %v1105, 1.0
      %v1146 = vadd.f32 %v1107, 1.0
      %v1147 = vadd.f32 %v1109, 1.0
      %v1148 = vadd.f32 %v1111, 1.0
      %v1149 = vadd.f32 %v1113, 1.0
      %v1150 = vadd.f32 %v1115, 1.0
      %v1151 = vadd.f32 %v1117, 1.0
      %v1152 = vadd.f32 %v1119, 1.0
      %v1153 = vadd.f32 %v1121, 1.0
      %v1154 = vrcp.pop %v1122
      %v1155 = vmul.f32 1.0, %v1154
      %v1156 = vrcp.pop %v1123
      %v1157 = vmul.f32 1.0, %v1156
      %v1158 = vrcp.pop %v1124
      %v1159 = vmul.f32 1.0, %v1158
      %v1160 = vrcp.pop %v1125
      %v1161 = vmul.f32 1.0, %v1160
      %v1162 = vrcp.pop %v1126
      %v1163 = vmul.f32 1.0, %v1162
      %v1164 = vrcp.pop %v1127
      %v1165 = vmul.f32 1.0, %v1164
      %v1166 = vrcp.pop %v1128
      %v1167 = vmul.f32 1.0, %v1166
      %v1168 = vrcp.pop %v1129
      %v1169 = vmul.f32 1.0, %v1168
      %v1170 = vrcp.pop %v1130
      %v1171 = vmul.f32 1.0, %v1170
      %v1172 = vrcp.pop %v1131
      %v1173 = vmul.f32 1.0, %v1172
      %v1174 = vrcp.pop %v1132
      %v1175 = vmul.f32 1.0, %v1174
      %v1176 = vrcp.pop %v1133
      %v1177 = vmul.f32 1.0, %v1176
      %v1178 = vrcp.pop %v1134
      %v1179 = vmul.f32 1.0, %v1178
      %v1180 = vrcp.pop %v1135
      %v1181 = vmul.f32 1.0, %v1180
      %v1182 = vrcp.pop %v1136
      %v1183 = vmul.f32 1.0, %v1182
      %v1184 = vrcp.pop %v1137
      %v1185 = vmul.f32 1.0, %v1184
      %v1186 = vrcp.pop %v1138
      %v1187 = vmul.f32 1.0, %v1186
      %v1188 = vrcp.pop %v1139
      %v1189 = vmul.f32 1.0, %v1188
      %v1190 = vrcp.pop %v1140
      %v1191 = vmul.f32 1.0, %v1190
      %v1192 = vrcp.pop %v1141
      %v1193 = vmul.f32 1.0, %v1192
      %v1194 = vrcp.pop %v1142
      %v1195 = vmul.f32 1.0, %v1194
      %v1196 = vrcp.pop %v1143
      %v1197 = vmul.f32 1.0, %v1196
      %v1198 = vrcp.pop %v1144
      %v1199 = vmul.f32 1.0, %v1198
      %v1200 = vrcp.pop %v1145
      %v1201 = vmul.f32 1.0, %v1200
      %v1202 = vrcp.pop %v1146
      %v1203 = vmul.f32 1.0, %v1202
      %v1204 = vrcp.pop %v1147
      %v1205 = vmul.f32 1.0, %v1204
      %v1206 = vrcp.pop %v1148
      %v1207 = vmul.f32 1.0, %v1206
      %v1208 = vrcp.pop %v1149
      %v1209 = vmul.f32 1.0, %v1208
      %v1210 = vrcp.pop %v1150
      %v1211 = vmul.f32 1.0, %v1210
      %v1212 = vrcp.pop %v1151
      %v1213 = vmul.f32 1.0, %v1212
      %v1214 = vrcp.pop %v1152
      %v1215 = vmul.f32 1.0, %v1214
      %v1216 = vrcp.pop %v1153
      %v1217 = vmul.f32 1.0, %v1216
      %v1218 = vmul.f32 %v958, %v1155
      %v1219 = vmul.f32 %v959, %v1157
      %v1220 = vmul.f32 %v960, %v1159
      %v1221 = vmul.f32 %v961, %v1161
      %v1222 = vmul.f32 %v962, %v1163
      %v1223 = vmul.f32 %v963, %v1165
      %v1224 = vmul.f32 %v964, %v1167
      %v1225 = vmul.f32 %v965, %v1169
      %v1226 = vmul.f32 %v966, %v1171
      %v1227 = vmul.f32 %v967, %v1173
      %v1228 = vmul.f32 %v968, %v1175
      %v1229 = vmul.f32 %v969, %v1177
      %v1230 = vmul.f32 %v970, %v1179
      %v1231 = vmul.f32 %v971, %v1181
      %v1232 = vmul.f32 %v972, %v1183
      %v1233 = vmul.f32 %v973, %v1185
      %v1234 = vmul.f32 %v974, %v1187
      %v1235 = vmul.f32 %v975, %v1189
      %v1236 = vmul.f32 %v976, %v1191
      %v1237 = vmul.f32 %v977, %v1193
      %v1238 = vmul.f32 %v978, %v1195
      %v1239 = vmul.f32 %v979, %v1197
      %v1240 = vmul.f32 %v980, %v1199
      %v1241 = vmul.f32 %v981, %v1201
      %v1242 = vmul.f32 %v982, %v1203
      %v1243 = vmul.f32 %v983, %v1205
      %v1244 = vmul.f32 %v984, %v1207
      %v1245 = vmul.f32 %v985, %v1209
      %v1246 = vmul.f32 %v986, %v1211
      %v1247 = vmul.f32 %v987, %v1213
      %v1248 = vmul.f32 %v988, %v1215
      %v1249 = vmul.f32 %v989, %v1217
      %vm1283 = vcmask 1040384
      %v1284 = vrot.slane 0.0, 7
      %v1285 = vsel %vm1283, %v1284, %v1284
      %v1286 = vrot.slane %v1218, 7
      %v1287 = vrot.slane %v1219, 7
      %v1288 = vsel %vm1283, %v1286, %v1287
      %v1289 = vrot.slane %v1220, 7
      %v1290 = vrot.slane %v1221, 7
      %v1291 = vsel %vm1283, %v1289, %v1290
      %v1292 = vrot.slane %v1222, 7
      %v1293 = vrot.slane %v1223, 7
      %v1294 = vsel %vm1283, %v1292, %v1293
      %v1295 = vrot.slane %v1224, 7
      %v1296 = vrot.slane %v1225, 7
      %v1297 = vsel %vm1283, %v1295, %v1296
      %v1298 = vrot.slane %v1226, 7
      %v1299 = vrot.slane %v1227, 7
      %v1300 = vsel %vm1283, %v1298, %v1299
      %v1301 = vrot.slane %v1228, 7
      %v1302 = vrot.slane %v1229, 7
      %v1303 = vsel %vm1283, %v1301, %v1302
      %v1304 = vrot.slane %v1230, 7
      %v1305 = vrot.slane %v1231, 7
      %v1306 = vsel %vm1283, %v1304, %v1305
      %v1307 = vrot.slane %v1232, 7
      %v1308 = vrot.slane %v1233, 7
      %v1309 = vsel %vm1283, %v1307, %v1308
      %v1310 = vrot.slane %v1234, 7
      %v1311 = vrot.slane %v1235, 7
      %v1312 = vsel %vm1283, %v1310, %v1311
      %v1313 = vrot.slane %v1236, 7
      %v1314 = vrot.slane %v1237, 7
      %v1315 = vsel %vm1283, %v1313, %v1314
      %v1316 = vrot.slane %v1238, 7
      %v1317 = vrot.slane %v1239, 7
      %v1318 = vsel %vm1283, %v1316, %v1317
      %v1319 = vrot.slane %v1240, 7
      %v1320 = vrot.slane %v1241, 7
      %v1321 = vsel %vm1283, %v1319, %v1320
      %v1322 = vrot.slane %v1242, 7
      %v1323 = vrot.slane %v1243, 7
      %v1324 = vsel %vm1283, %v1322, %v1323
      %v1325 = vrot.slane %v1244, 7
      %v1326 = vrot.slane %v1245, 7
      %v1327 = vsel %vm1283, %v1325, %v1326
      %v1328 = vrot.slane %v1246, 7
      %v1329 = vrot.slane %v1247, 7
      %v1330 = vsel %vm1283, %v1328, %v1329
      %v1331 = vrot.slane %v1248, 7
      %v1332 = vrot.slane %v1249, 7
      %v1333 = vsel %vm1283, %v1331, %v1332
      %v1384 = vsel %vm1283, 0.0, %v1284
      %v1385 = vsel %vm1283, 0.0, %v1286
      %v1386 = vsel %vm1283, 0.0, %v1289
      %v1387 = vsel %vm1283, 0.0, %v1292
      %v1388 = vsel %vm1283, 0.0, %v1295
      %v1389 = vsel %vm1283, 0.0, %v1298
      %v1390 = vsel %vm1283, 0.0, %v1301
      %v1391 = vsel %vm1283, 0.0, %v1304
      %v1392 = vsel %vm1283, 0.0, %v1307
      %v1393 = vsel %vm1283, 0.0, %v1310
      %v1394 = vsel %vm1283, 0.0, %v1313
      %v1395 = vsel %vm1283, 0.0, %v1316
      %v1396 = vsel %vm1283, 0.0, %v1319
      %v1397 = vsel %vm1283, 0.0, %v1322
      %v1398 = vsel %vm1283, 0.0, %v1325
      %v1399 = vsel %vm1283, 0.0, %v1328
      %v1400 = vsel %vm1283, 0.0, %v1331
      %v1401 = vsel %vm1283, %v1284, 0.0
      %v1402 = vsel %vm1283, %v1287, 0.0
      %v1403 = vsel %vm1283, %v1290, 0.0
      %v1404 = vsel %vm1283, %v1293, 0.0
      %v1405 = vsel %vm1283, %v1296, 0.0
      %v1406 = vsel %vm1283, %v1299, 0.0
      %v1407 = vsel %vm1283, %v1302, 0.0
      %v1408 = vsel %vm1283, %v1305, 0.0
      %v1409 = vsel %vm1283, %v1308, 0.0
      %v1410 = vsel %vm1283, %v1311, 0.0
      %v1411 = vsel %vm1283, %v1314, 0.0
      %v1412 = vsel %vm1283, %v1317, 0.0
      %v1413 = vsel %vm1283, %v1320, 0.0
      %v1414 = vsel %vm1283, %v1323, 0.0
      %v1415 = vsel %vm1283, %v1326, 0.0
      %v1416 = vsel %vm1283, %v1329, 0.0
      %v1417 = vsel %vm1283, %v1332, 0.0
      %v1418 = vlaneseq
      %v1419 = vshrl.u32 %v1418, 7
      %v1420 = vsub.s32 0, %v1419
      %v1421 = vrot.slane %v231, %v1420
      %v1422 = vmul.f32 %v1384, %v1421
      %v1423 = vmul.f32 %v1285, %v1421
      %v1424 = vmul.f32 %v1385, %v1421
      %v1425 = vmul.f32 %v1288, %v1421
      %v1426 = vmul.f32 %v1386, %v1421
      %v1427 = vmul.f32 %v1291, %v1421
      %v1428 = vmul.f32 %v1387, %v1421
      %v1429 = vmul.f32 %v1294, %v1421
      %v1430 = vmul.f32 %v1388, %v1421
      %v1431 = vmul.f32 %v1297, %v1421
      %v1432 = vmul.f32 %v1389, %v1421
      %v1433 = vmul.f32 %v1300, %v1421
      %v1434 = vmul.f32 %v1390, %v1421
      %v1435 = vmul.f32 %v1303, %v1421
      %v1436 = vmul.f32 %v1391, %v1421
      %v1437 = vmul.f32 %v1306, %v1421
      %v1438 = vmul.f32 %v1392, %v1421
      %v1439 = vmul.f32 %v1309, %v1421
      %v1440 = vmul.f32 %v1393, %v1421
      %v1441 = vmul.f32 %v1312, %v1421
      %v1442 = vmul.f32 %v1394, %v1421
      %v1443 = vmul.f32 %v1315, %v1421
      %v1444 = vmul.f32 %v1395, %v1421
      %v1445 = vmul.f32 %v1318, %v1421
      %v1446 = vmul.f32 %v1396, %v1421
      %v1447 = vmul.f32 %v1321, %v1421
      %v1448 = vmul.f32 %v1397, %v1421
      %v1449 = vmul.f32 %v1324, %v1421
      %v1450 = vmul.f32 %v1398, %v1421
      %v1451 = vmul.f32 %v1327, %v1421
      %v1452 = vmul.f32 %v1399, %v1421
      %v1453 = vmul.f32 %v1330, %v1421
      %v1454 = vlaneseq
      %v1455 = vshrl.u32 %v1454, 7
      %v1456 = vsub.s32 1, %v1455
      %v1457 = vrot.slane %v231, %v1456
      %v1458 = vmul.f32 %v1384, %v1457
      %v1459 = vmul.f32 %v1285, %v1457
      %v1460 = vmul.f32 %v1401, %v1457
      %v1461 = vmul.f32 %v1385, %v1457
      %v1462 = vmul.f32 %v1288, %v1457
      %v1463 = vmul.f32 %v1402, %v1457
      %v1464 = vmul.f32 %v1386, %v1457
      %v1465 = vmul.f32 %v1291, %v1457
      %v1466 = vmul.f32 %v1403, %v1457
      %v1467 = vmul.f32 %v1387, %v1457
      %v1468 = vmul.f32 %v1294, %v1457
      %v1469 = vmul.f32 %v1404, %v1457
      %v1470 = vmul.f32 %v1388, %v1457
      %v1471 = vmul.f32 %v1297, %v1457
      %v1472 = vmul.f32 %v1405, %v1457
      %v1473 = vmul.f32 %v1389, %v1457
      %v1474 = vmul.f32 %v1300, %v1457
      %v1475 = vmul.f32 %v1406, %v1457
      %v1476 = vmul.f32 %v1390, %v1457
      %v1477 = vmul.f32 %v1303, %v1457
      %v1478 = vmul.f32 %v1407, %v1457
      %v1479 = vmul.f32 %v1391, %v1457
      %v1480 = vmul.f32 %v1306, %v1457
      %v1481 = vmul.f32 %v1408, %v1457
      %v1482 = vmul.f32 %v1392, %v1457
      %v1483 = vmul.f32 %v1309, %v1457
      %v1484 = vmul.f32 %v1409, %v1457
      %v1485 = vmul.f32 %v1393, %v1457
      %v1486 = vmul.f32 %v1312, %v1457
      %v1487 = vmul.f32 %v1410, %v1457
      %v1488 = vmul.f32 %v1394, %v1457
      %v1489 = vmul.f32 %v1315, %v1457
      %v1490 = vmul.f32 %v1411, %v1457
      %v1491 = vmul.f32 %v1395, %v1457
      %v1492 = vmul.f32 %v1318, %v1457
      %v1493 = vmul.f32 %v1412, %v1457
      %v1494 = vmul.f32 %v1396, %v1457
      %v1495 = vmul.f32 %v1321, %v1457
      %v1496 = vmul.f32 %v1413, %v1457
      %v1497 = vmul.f32 %v1397, %v1457
      %v1498 = vmul.f32 %v1324, %v1457
      %v1499 = vmul.f32 %v1414, %v1457
      %v1500 = vmul.f32 %v1398, %v1457
      %v1501 = vmul.f32 %v1327, %v1457
      %v1502 = vmul.f32 %v1415, %v1457
      %v1503 = vmul.f32 %v1399, %v1457
      %v1504 = vmul.f32 %v1330, %v1457
      %v1505 = vmul.f32 %v1416, %v1457
      %vm1554 = vcmask 1046528
      %v1555 = vrot.slane %v1458, 1
      %v1556 = vrot.slane %v1459, 1
      %v1557 = vsel %vm1554, %v1555, %v1556
      %v1558 = vrot.slane %v1460, 1
      %v1559 = vsel %vm1554, %v1556, %v1558
      %v1560 = vrot.slane %v1461, 1
      %v1561 = vrot.slane %v1462, 1
      %v1562 = vsel %vm1554, %v1560, %v1561
      %v1563 = vrot.slane %v1463, 1
      %v1564 = vsel %vm1554, %v1561, %v1563
      %v1565 = vrot.slane %v1464, 1
      %v1566 = vrot.slane %v1465, 1
      %v1567 = vsel %vm1554, %v1565, %v1566
      %v1568 = vrot.slane %v1466, 1
      %v1569 = vsel %vm1554, %v1566, %v1568
      %v1570 = vrot.slane %v1467, 1
      %v1571 = vrot.slane %v1468, 1
      %v1572 = vsel %vm1554, %v1570, %v1571
      %v1573 = vrot.slane %v1469, 1
      %v1574 = vsel %vm1554, %v1571, %v1573
      %v1575 = vrot.slane %v1470, 1
      %v1576 = vrot.slane %v1471, 1
      %v1577 = vsel %vm1554, %v1575, %v1576
      %v1578 = vrot.slane %v1472, 1
      %v1579 = vsel %vm1554, %v1576, %v1578
      %v1580 = vrot.slane %v1473, 1
      %v1581 = vrot.slane %v1474, 1
      %v1582 = vsel %vm1554, %v1580, %v1581
      %v1583 = vrot.slane %v1475, 1
      %v1584 = vsel %vm1554, %v1581, %v1583
      %v1585 = vrot.slane %v1476, 1
      %v1586 = vrot.slane %v1477, 1
      %v1587 = vsel %vm1554, %v1585, %v1586
      %v1588 = vrot.slane %v1478, 1
      %v1589 = vsel %vm1554, %v1586, %v1588
      %v1590 = vrot.slane %v1479, 1
      %v1591 = vrot.slane %v1480, 1
      %v1592 = vsel %vm1554, %v1590, %v1591
      %v1593 = vrot.slane %v1481, 1
      %v1594 = vsel %vm1554, %v1591, %v1593
      %v1595 = vrot.slane %v1482, 1
      %v1596 = vrot.slane %v1483, 1
      %v1597 = vsel %vm1554, %v1595, %v1596
      %v1598 = vrot.slane %v1484, 1
      %v1599 = vsel %vm1554, %v1596, %v1598
      %v1600 = vrot.slane %v1485, 1
      %v1601 = vrot.slane %v1486, 1
      %v1602 = vsel %vm1554, %v1600, %v1601
      %v1603 = vrot.slane %v1487, 1
      %v1604 = vsel %vm1554, %v1601, %v1603
      %v1605 = vrot.slane %v1488, 1
      %v1606 = vrot.slane %v1489, 1
      %v1607 = vsel %vm1554, %v1605, %v1606
      %v1608 = vrot.slane %v1490, 1
      %v1609 = vsel %vm1554, %v1606, %v1608
      %v1610 = vrot.slane %v1491, 1
      %v1611 = vrot.slane %v1492, 1
      %v1612 = vsel %vm1554, %v1610, %v1611
      %v1613 = vrot.slane %v1493, 1
      %v1614 = vsel %vm1554, %v1611, %v1613
      %v1615 = vrot.slane %v1494, 1
      %v1616 = vrot.slane %v1495, 1
      %v1617 = vsel %vm1554, %v1615, %v1616
      %v1618 = vrot.slane %v1496, 1
      %v1619 = vsel %vm1554, %v1616, %v1618
      %v1620 = vrot.slane %v1497, 1
      %v1621 = vrot.slane %v1498, 1
      %v1622 = vsel %vm1554, %v1620, %v1621
      %v1623 = vrot.slane %v1499, 1
      %v1624 = vsel %vm1554, %v1621, %v1623
      %v1625 = vrot.slane %v1500, 1
      %v1626 = vrot.slane %v1501, 1
      %v1627 = vsel %vm1554, %v1625, %v1626
      %v1628 = vrot.slane %v1502, 1
      %v1629 = vsel %vm1554, %v1626, %v1628
      %v1630 = vrot.slane %v1503, 1
      %v1631 = vrot.slane %v1504, 1
      %v1632 = vsel %vm1554, %v1630, %v1631
      %v1633 = vrot.slane %v1505, 1
      %v1634 = vsel %vm1554, %v1631, %v1633
      %v1667 = vadd.f32 %v1422, %v1557
      %v1668 = vadd.f32 %v1423, %v1559
      %v1669 = vadd.f32 %v1424, %v1562
      %v1670 = vadd.f32 %v1425, %v1564
      %v1671 = vadd.f32 %v1426, %v1567
      %v1672 = vadd.f32 %v1427, %v1569
      %v1673 = vadd.f32 %v1428, %v1572
      %v1674 = vadd.f32 %v1429, %v1574
      %v1675 = vadd.f32 %v1430, %v1577
      %v1676 = vadd.f32 %v1431, %v1579
      %v1677 = vadd.f32 %v1432, %v1582
      %v1678 = vadd.f32 %v1433, %v1584
      %v1679 = vadd.f32 %v1434, %v1587
      %v1680 = vadd.f32 %v1435, %v1589
      %v1681 = vadd.f32 %v1436, %v1592
      %v1682 = vadd.f32 %v1437, %v1594
      %v1683 = vadd.f32 %v1438, %v1597
      %v1684 = vadd.f32 %v1439, %v1599
      %v1685 = vadd.f32 %v1440, %v1602
      %v1686 = vadd.f32 %v1441, %v1604
      %v1687 = vadd.f32 %v1442, %v1607
      %v1688 = vadd.f32 %v1443, %v1609
      %v1689 = vadd.f32 %v1444, %v1612
      %v1690 = vadd.f32 %v1445, %v1614
      %v1691 = vadd.f32 %v1446, %v1617
      %v1692 = vadd.f32 %v1447, %v1619
      %v1693 = vadd.f32 %v1448, %v1622
      %v1694 = vadd.f32 %v1449, %v1624
      %v1695 = vadd.f32 %v1450, %v1627
      %v1696 = vadd.f32 %v1451, %v1629
      %v1697 = vadd.f32 %v1452, %v1632
      %v1698 = vadd.f32 %v1453, %v1634
      %v1699 = vlaneseq
      %v1700 = vshrl.u32 %v1699, 7
      %v1701 = vsub.s32 2, %v1700
      %v1702 = vrot.slane %v231, %v1701
      %v1703 = vmul.f32 %v1384, %v1702
      %v1704 = vmul.f32 %v1285, %v1702
      %v1705 = vmul.f32 %v1401, %v1702
      %v1706 = vmul.f32 %v1385, %v1702
      %v1707 = vmul.f32 %v1288, %v1702
      %v1708 = vmul.f32 %v1402, %v1702
      %v1709 = vmul.f32 %v1386, %v1702
      %v1710 = vmul.f32 %v1291, %v1702
      %v1711 = vmul.f32 %v1403, %v1702
      %v1712 = vmul.f32 %v1387, %v1702
      %v1713 = vmul.f32 %v1294, %v1702
      %v1714 = vmul.f32 %v1404, %v1702
      %v1715 = vmul.f32 %v1388, %v1702
      %v1716 = vmul.f32 %v1297, %v1702
      %v1717 = vmul.f32 %v1405, %v1702
      %v1718 = vmul.f32 %v1389, %v1702
      %v1719 = vmul.f32 %v1300, %v1702
      %v1720 = vmul.f32 %v1406, %v1702
      %v1721 = vmul.f32 %v1390, %v1702
      %v1722 = vmul.f32 %v1303, %v1702
      %v1723 = vmul.f32 %v1407, %v1702
      %v1724 = vmul.f32 %v1391, %v1702
      %v1725 = vmul.f32 %v1306, %v1702
      %v1726 = vmul.f32 %v1408, %v1702
      %v1727 = vmul.f32 %v1392, %v1702
      %v1728 = vmul.f32 %v1309, %v1702
      %v1729 = vmul.f32 %v1409, %v1702
      %v1730 = vmul.f32 %v1393, %v1702
      %v1731 = vmul.f32 %v1312, %v1702
      %v1732 = vmul.f32 %v1410, %v1702
      %v1733 = vmul.f32 %v1394, %v1702
      %v1734 = vmul.f32 %v1315, %v1702
      %v1735 = vmul.f32 %v1411, %v1702
      %v1736 = vmul.f32 %v1395, %v1702
      %v1737 = vmul.f32 %v1318, %v1702
      %v1738 = vmul.f32 %v1412, %v1702
      %v1739 = vmul.f32 %v1396, %v1702
      %v1740 = vmul.f32 %v1321, %v1702
      %v1741 = vmul.f32 %v1413, %v1702
      %v1742 = vmul.f32 %v1397, %v1702
      %v1743 = vmul.f32 %v1324, %v1702
      %v1744 = vmul.f32 %v1414, %v1702
      %v1745 = vmul.f32 %v1398, %v1702
      %v1746 = vmul.f32 %v1327, %v1702
      %v1747 = vmul.f32 %v1415, %v1702
      %v1748 = vmul.f32 %v1399, %v1702
      %v1749 = vmul.f32 %v1330, %v1702
      %v1750 = vmul.f32 %v1416, %v1702
      %vm1799 = vcmask 1045504
      %v1800 = vrot.slane %v1703, 2
      %v1801 = vrot.slane %v1704, 2
      %v1802 = vsel %vm1799, %v1800, %v1801
      %v1803 = vrot.slane %v1705, 2
      %v1804 = vsel %vm1799, %v1801, %v1803
      %v1805 = vrot.slane %v1706, 2
      %v1806 = vrot.slane %v1707, 2
      %v1807 = vsel %vm1799, %v1805, %v1806
      %v1808 = vrot.slane %v1708, 2
      %v1809 = vsel %vm1799, %v1806, %v1808
      %v1810 = vrot.slane %v1709, 2
      %v1811 = vrot.slane %v1710, 2
      %v1812 = vsel %vm1799, %v1810, %v1811
      %v1813 = vrot.slane %v1711, 2
      %v1814 = vsel %vm1799, %v1811, %v1813
      %v1815 = vrot.slane %v1712, 2
      %v1816 = vrot.slane %v1713, 2
      %v1817 = vsel %vm1799, %v1815, %v1816
      %v1818 = vrot.slane %v1714, 2
      %v1819 = vsel %vm1799, %v1816, %v1818
      %v1820 = vrot.slane %v1715, 2
      %v1821 = vrot.slane %v1716, 2
      %v1822 = vsel %vm1799, %v1820, %v1821
      %v1823 = vrot.slane %v1717, 2
      %v1824 = vsel %vm1799, %v1821, %v1823
      %v1825 = vrot.slane %v1718, 2
      %v1826 = vrot.slane %v1719, 2
      %v1827 = vsel %vm1799, %v1825, %v1826
      %v1828 = vrot.slane %v1720, 2
      %v1829 = vsel %vm1799, %v1826, %v1828
      %v1830 = vrot.slane %v1721, 2
      %v1831 = vrot.slane %v1722, 2
      %v1832 = vsel %vm1799, %v1830, %v1831
      %v1833 = vrot.slane %v1723, 2
      %v1834 = vsel %vm1799, %v1831, %v1833
      %v1835 = vrot.slane %v1724, 2
      %v1836 = vrot.slane %v1725, 2
      %v1837 = vsel %vm1799, %v1835, %v1836
      %v1838 = vrot.slane %v1726, 2
      %v1839 = vsel %vm1799, %v1836, %v1838
      %v1840 = vrot.slane %v1727, 2
      %v1841 = vrot.slane %v1728, 2
      %v1842 = vsel %vm1799, %v1840, %v1841
      %v1843 = vrot.slane %v1729, 2
      %v1844 = vsel %vm1799, %v1841, %v1843
      %v1845 = vrot.slane %v1730, 2
      %v1846 = vrot.slane %v1731, 2
      %v1847 = vsel %vm1799, %v1845, %v1846
      %v1848 = vrot.slane %v1732, 2
      %v1849 = vsel %vm1799, %v1846, %v1848
      %v1850 = vrot.slane %v1733, 2
      %v1851 = vrot.slane %v1734, 2
      %v1852 = vsel %vm1799, %v1850, %v1851
      %v1853 = vrot.slane %v1735, 2
      %v1854 = vsel %vm1799, %v1851, %v1853
      %v1855 = vrot.slane %v1736, 2
      %v1856 = vrot.slane %v1737, 2
      %v1857 = vsel %vm1799, %v1855, %v1856
      %v1858 = vrot.slane %v1738, 2
      %v1859 = vsel %vm1799, %v1856, %v1858
      %v1860 = vrot.slane %v1739, 2
      %v1861 = vrot.slane %v1740, 2
      %v1862 = vsel %vm1799, %v1860, %v1861
      %v1863 = vrot.slane %v1741, 2
      %v1864 = vsel %vm1799, %v1861, %v1863
      %v1865 = vrot.slane %v1742, 2
      %v1866 = vrot.slane %v1743, 2
      %v1867 = vsel %vm1799, %v1865, %v1866
      %v1868 = vrot.slane %v1744, 2
      %v1869 = vsel %vm1799, %v1866, %v1868
      %v1870 = vrot.slane %v1745, 2
      %v1871 = vrot.slane %v1746, 2
      %v1872 = vsel %vm1799, %v1870, %v1871
      %v1873 = vrot.slane %v1747, 2
      %v1874 = vsel %vm1799, %v1871, %v1873
      %v1875 = vrot.slane %v1748, 2
      %v1876 = vrot.slane %v1749, 2
      %v1877 = vsel %vm1799, %v1875, %v1876
      %v1878 = vrot.slane %v1750, 2
      %v1879 = vsel %vm1799, %v1876, %v1878
      %v1912 = vadd.f32 %v1667, %v1802
      %v1913 = vadd.f32 %v1668, %v1804
      %v1914 = vadd.f32 %v1669, %v1807
      %v1915 = vadd.f32 %v1670, %v1809
      %v1916 = vadd.f32 %v1671, %v1812
      %v1917 = vadd.f32 %v1672, %v1814
      %v1918 = vadd.f32 %v1673, %v1817
      %v1919 = vadd.f32 %v1674, %v1819
      %v1920 = vadd.f32 %v1675, %v1822
      %v1921 = vadd.f32 %v1676, %v1824
      %v1922 = vadd.f32 %v1677, %v1827
      %v1923 = vadd.f32 %v1678, %v1829
      %v1924 = vadd.f32 %v1679, %v1832
      %v1925 = vadd.f32 %v1680, %v1834
      %v1926 = vadd.f32 %v1681, %v1837
      %v1927 = vadd.f32 %v1682, %v1839
      %v1928 = vadd.f32 %v1683, %v1842
      %v1929 = vadd.f32 %v1684, %v1844
      %v1930 = vadd.f32 %v1685, %v1847
      %v1931 = vadd.f32 %v1686, %v1849
      %v1932 = vadd.f32 %v1687, %v1852
      %v1933 = vadd.f32 %v1688, %v1854
      %v1934 = vadd.f32 %v1689, %v1857
      %v1935 = vadd.f32 %v1690, %v1859
      %v1936 = vadd.f32 %v1691, %v1862
      %v1937 = vadd.f32 %v1692, %v1864
      %v1938 = vadd.f32 %v1693, %v1867
      %v1939 = vadd.f32 %v1694, %v1869
      %v1940 = vadd.f32 %v1695, %v1872
      %v1941 = vadd.f32 %v1696, %v1874
      %v1942 = vadd.f32 %v1697, %v1877
      %v1943 = vadd.f32 %v1698, %v1879
      %v1944 = vlaneseq
      %v1945 = vshrl.u32 %v1944, 7
      %v1946 = vsub.s32 3, %v1945
      %v1947 = vrot.slane %v231, %v1946
      %v1948 = vmul.f32 %v1385, %v1947
      %v1949 = vmul.f32 %v1288, %v1947
      %v1950 = vmul.f32 %v1386, %v1947
      %v1951 = vmul.f32 %v1291, %v1947
      %v1952 = vmul.f32 %v1387, %v1947
      %v1953 = vmul.f32 %v1294, %v1947
      %v1954 = vmul.f32 %v1388, %v1947
      %v1955 = vmul.f32 %v1297, %v1947
      %v1956 = vmul.f32 %v1389, %v1947
      %v1957 = vmul.f32 %v1300, %v1947
      %v1958 = vmul.f32 %v1390, %v1947
      %v1959 = vmul.f32 %v1303, %v1947
      %v1960 = vmul.f32 %v1391, %v1947
      %v1961 = vmul.f32 %v1306, %v1947
      %v1962 = vmul.f32 %v1392, %v1947
      %v1963 = vmul.f32 %v1309, %v1947
      %v1964 = vmul.f32 %v1393, %v1947
      %v1965 = vmul.f32 %v1312, %v1947
      %v1966 = vmul.f32 %v1394, %v1947
      %v1967 = vmul.f32 %v1315, %v1947
      %v1968 = vmul.f32 %v1395, %v1947
      %v1969 = vmul.f32 %v1318, %v1947
      %v1970 = vmul.f32 %v1396, %v1947
      %v1971 = vmul.f32 %v1321, %v1947
      %v1972 = vmul.f32 %v1397, %v1947
      %v1973 = vmul.f32 %v1324, %v1947
      %v1974 = vmul.f32 %v1398, %v1947
      %v1975 = vmul.f32 %v1327, %v1947
      %v1976 = vmul.f32 %v1399, %v1947
      %v1977 = vmul.f32 %v1330, %v1947
      %v1978 = vmul.f32 %v1400, %v1947
      %v1979 = vmul.f32 %v1333, %v1947
      %v1980 = vadd.f32 %v1912, %v1948
      %v1981 = vadd.f32 %v1913, %v1949
      %v1982 = vadd.f32 %v1914, %v1950
      %v1983 = vadd.f32 %v1915, %v1951
      %v1984 = vadd.f32 %v1916, %v1952
      %v1985 = vadd.f32 %v1917, %v1953
      %v1986 = vadd.f32 %v1918, %v1954
      %v1987 = vadd.f32 %v1919, %v1955
      %v1988 = vadd.f32 %v1920, %v1956
      %v1989 = vadd.f32 %v1921, %v1957
      %v1990 = vadd.f32 %v1922, %v1958
      %v1991 = vadd.f32 %v1923, %v1959
      %v1992 = vadd.f32 %v1924, %v1960
      %v1993 = vadd.f32 %v1925, %v1961
      %v1994 = vadd.f32 %v1926, %v1962
      %v1995 = vadd.f32 %v1927, %v1963
      %v1996 = vadd.f32 %v1928, %v1964
      %v1997 = vadd.f32 %v1929, %v1965
      %v1998 = vadd.f32 %v1930, %v1966
      %v1999 = vadd.f32 %v1931, %v1967
      %v2000 = vadd.f32 %v1932, %v1968
      %v2001 = vadd.f32 %v1933, %v1969
      %v2002 = vadd.f32 %v1934, %v1970
      %v2003 = vadd.f32 %v1935, %v1971
      %v2004 = vadd.f32 %v1936, %v1972
      %v2005 = vadd.f32 %v1937, %v1973
      %v2006 = vadd.f32 %v1938, %v1974
      %v2007 = vadd.f32 %v1939, %v1975
      %v2008 = vadd.f32 %v1940, %v1976
      %v2009 = vadd.f32 %v1941, %v1977
      %v2010 = vadd.f32 %v1942, %v1978
      %v2011 = vadd.f32 %v1943, %v1979
      %v2012 = vlaneseq
      %v2013 = vshrl.u32 %v2012, 7
      %v2014 = vsub.s32 4, %v2013
      %v2015 = vrot.slane %v231, %v2014
      %v2016 = vmul.f32 %v1385, %v2015
      %v2017 = vmul.f32 %v1288, %v2015
      %v2018 = vmul.f32 %v1402, %v2015
      %v2019 = vmul.f32 %v1386, %v2015
      %v2020 = vmul.f32 %v1291, %v2015
      %v2021 = vmul.f32 %v1403, %v2015
      %v2022 = vmul.f32 %v1387, %v2015
      %v2023 = vmul.f32 %v1294, %v2015
      %v2024 = vmul.f32 %v1404, %v2015
      %v2025 = vmul.f32 %v1388, %v2015
      %v2026 = vmul.f32 %v1297, %v2015
      %v2027 = vmul.f32 %v1405, %v2015
      %v2028 = vmul.f32 %v1389, %v2015
      %v2029 = vmul.f32 %v1300, %v2015
      %v2030 = vmul.f32 %v1406, %v2015
      %v2031 = vmul.f32 %v1390, %v2015
      %v2032 = vmul.f32 %v1303, %v2015
      %v2033 = vmul.f32 %v1407, %v2015
      %v2034 = vmul.f32 %v1391, %v2015
      %v2035 = vmul.f32 %v1306, %v2015
      %v2036 = vmul.f32 %v1408, %v2015
      %v2037 = vmul.f32 %v1392, %v2015
      %v2038 = vmul.f32 %v1309, %v2015
      %v2039 = vmul.f32 %v1409, %v2015
      %v2040 = vmul.f32 %v1393, %v2015
      %v2041 = vmul.f32 %v1312, %v2015
      %v2042 = vmul.f32 %v1410, %v2015
      %v2043 = vmul.f32 %v1394, %v2015
      %v2044 = vmul.f32 %v1315, %v2015
      %v2045 = vmul.f32 %v1411, %v2015
      %v2046 = vmul.f32 %v1395, %v2015
      %v2047 = vmul.f32 %v1318, %v2015
      %v2048 = vmul.f32 %v1412, %v2015
      %v2049 = vmul.f32 %v1396, %v2015
      %v2050 = vmul.f32 %v1321, %v2015
      %v2051 = vmul.f32 %v1413, %v2015
      %v2052 = vmul.f32 %v1397, %v2015
      %v2053 = vmul.f32 %v1324, %v2015
      %v2054 = vmul.f32 %v1414, %v2015
      %v2055 = vmul.f32 %v1398, %v2015
      %v2056 = vmul.f32 %v1327, %v2015
      %v2057 = vmul.f32 %v1415, %v2015
      %v2058 = vmul.f32 %v1399, %v2015
      %v2059 = vmul.f32 %v1330, %v2015
      %v2060 = vmul.f32 %v1416, %v2015
      %v2061 = vmul.f32 %v1400, %v2015
      %v2062 = vmul.f32 %v1333, %v2015
      %v2063 = vmul.f32 %v1417, %v2015
      %v2112 = vrot.slane %v2016, 1
      %v2113 = vrot.slane %v2017, 1
      %v2114 = vsel %vm1554, %v2112, %v2113
      %v2115 = vrot.slane %v2018, 1
      %v2116 = vsel %vm1554, %v2113, %v2115
      %v2117 = vrot.slane %v2019, 1
      %v2118 = vrot.slane %v2020, 1
      %v2119 = vsel %vm1554, %v2117, %v2118
      %v2120 = vrot.slane %v2021, 1
      %v2121 = vsel %vm1554, %v2118, %v2120
      %v2122 = vrot.slane %v2022, 1
      %v2123 = vrot.slane %v2023, 1
      %v2124 = vsel %vm1554, %v2122, %v2123
      %v2125 = vrot.slane %v2024, 1
      %v2126 = vsel %vm1554, %v2123, %v2125
      %v2127 = vrot.slane %v2025, 1
      %v2128 = vrot.slane %v2026, 1
      %v2129 = vsel %vm1554, %v2127, %v2128
      %v2130 = vrot.slane %v2027, 1
      %v2131 = vsel %vm1554, %v2128, %v2130
      %v2132 = vrot.slane %v2028, 1
      %v2133 = vrot.slane %v2029, 1
      %v2134 = vsel %vm1554, %v2132, %v2133
      %v2135 = vrot.slane %v2030, 1
      %v2136 = vsel %vm1554, %v2133, %v2135
      %v2137 = vrot.slane %v2031, 1
      %v2138 = vrot.slane %v2032, 1
      %v2139 = vsel %vm1554, %v2137, %v2138
      %v2140 = vrot.slane %v2033, 1
      %v2141 = vsel %vm1554, %v2138, %v2140
      %v2142 = vrot.slane %v2034, 1
      %v2143 = vrot.slane %v2035, 1
      %v2144 = vsel %vm1554, %v2142, %v2143
      %v2145 = vrot.slane %v2036, 1
      %v2146 = vsel %vm1554, %v2143, %v2145
      %v2147 = vrot.slane %v2037, 1
      %v2148 = vrot.slane %v2038, 1
      %v2149 = vsel %vm1554, %v2147, %v2148
      %v2150 = vrot.slane %v2039, 1
      %v2151 = vsel %vm1554, %v2148, %v2150
      %v2152 = vrot.slane %v2040, 1
      %v2153 = vrot.slane %v2041, 1
      %v2154 = vsel %vm1554, %v2152, %v2153
      %v2155 = vrot.slane %v2042, 1
      %v2156 = vsel %vm1554, %v2153, %v2155
      %v2157 = vrot.slane %v2043, 1
      %v2158 = vrot.slane %v2044, 1
      %v2159 = vsel %vm1554, %v2157, %v2158
      %v2160 = vrot.slane %v2045, 1
      %v2161 = vsel %vm1554, %v2158, %v2160
      %v2162 = vrot.slane %v2046, 1
      %v2163 = vrot.slane %v2047, 1
      %v2164 = vsel %vm1554, %v2162, %v2163
      %v2165 = vrot.slane %v2048, 1
      %v2166 = vsel %vm1554, %v2163, %v2165
      %v2167 = vrot.slane %v2049, 1
      %v2168 = vrot.slane %v2050, 1
      %v2169 = vsel %vm1554, %v2167, %v2168
      %v2170 = vrot.slane %v2051, 1
      %v2171 = vsel %vm1554, %v2168, %v2170
      %v2172 = vrot.slane %v2052, 1
      %v2173 = vrot.slane %v2053, 1
      %v2174 = vsel %vm1554, %v2172, %v2173
      %v2175 = vrot.slane %v2054, 1
      %v2176 = vsel %vm1554, %v2173, %v2175
      %v2177 = vrot.slane %v2055, 1
      %v2178 = vrot.slane %v2056, 1
      %v2179 = vsel %vm1554, %v2177, %v2178
      %v2180 = vrot.slane %v2057, 1
      %v2181 = vsel %vm1554, %v2178, %v2180
      %v2182 = vrot.slane %v2058, 1
      %v2183 = vrot.slane %v2059, 1
      %v2184 = vsel %vm1554, %v2182, %v2183
      %v2185 = vrot.slane %v2060, 1
      %v2186 = vsel %vm1554, %v2183, %v2185
      %v2187 = vrot.slane %v2061, 1
      %v2188 = vrot.slane %v2062, 1
      %v2189 = vsel %vm1554, %v2187, %v2188
      %v2190 = vrot.slane %v2063, 1
      %v2191 = vsel %vm1554, %v2188, %v2190
      %v2224 = vadd.f32 %v1980, %v2114
      %v2225 = vadd.f32 %v1981, %v2116
      %v2226 = vadd.f32 %v1982, %v2119
      %v2227 = vadd.f32 %v1983, %v2121
      %v2228 = vadd.f32 %v1984, %v2124
      %v2229 = vadd.f32 %v1985, %v2126
      %v2230 = vadd.f32 %v1986, %v2129
      %v2231 = vadd.f32 %v1987, %v2131
      %v2232 = vadd.f32 %v1988, %v2134
      %v2233 = vadd.f32 %v1989, %v2136
      %v2234 = vadd.f32 %v1990, %v2139
      %v2235 = vadd.f32 %v1991, %v2141
      %v2236 = vadd.f32 %v1992, %v2144
      %v2237 = vadd.f32 %v1993, %v2146
      %v2238 = vadd.f32 %v1994, %v2149
      %v2239 = vadd.f32 %v1995, %v2151
      %v2240 = vadd.f32 %v1996, %v2154
      %v2241 = vadd.f32 %v1997, %v2156
      %v2242 = vadd.f32 %v1998, %v2159
      %v2243 = vadd.f32 %v1999, %v2161
      %v2244 = vadd.f32 %v2000, %v2164
      %v2245 = vadd.f32 %v2001, %v2166
      %v2246 = vadd.f32 %v2002, %v2169
      %v2247 = vadd.f32 %v2003, %v2171
      %v2248 = vadd.f32 %v2004, %v2174
      %v2249 = vadd.f32 %v2005, %v2176
      %v2250 = vadd.f32 %v2006, %v2179
      %v2251 = vadd.f32 %v2007, %v2181
      %v2252 = vadd.f32 %v2008, %v2184
      %v2253 = vadd.f32 %v2009, %v2186
      %v2254 = vadd.f32 %v2010, %v2189
      %v2255 = vadd.f32 %v2011, %v2191
      %v2256 = vlaneseq
      %v2257 = vshrl.u32 %v2256, 7
      %v2258 = vsub.s32 5, %v2257
      %v2259 = vrot.slane %v231, %v2258
      %v2260 = vmul.f32 %v1385, %v2259
      %v2261 = vmul.f32 %v1288, %v2259
      %v2262 = vmul.f32 %v1402, %v2259
      %v2263 = vmul.f32 %v1386, %v2259
      %v2264 = vmul.f32 %v1291, %v2259
      %v2265 = vmul.f32 %v1403, %v2259
      %v2266 = vmul.f32 %v1387, %v2259
      %v2267 = vmul.f32 %v1294, %v2259
      %v2268 = vmul.f32 %v1404, %v2259
      %v2269 = vmul.f32 %v1388, %v2259
      %v2270 = vmul.f32 %v1297, %v2259
      %v2271 = vmul.f32 %v1405, %v2259
      %v2272 = vmul.f32 %v1389, %v2259
      %v2273 = vmul.f32 %v1300, %v2259
      %v2274 = vmul.f32 %v1406, %v2259
      %v2275 = vmul.f32 %v1390, %v2259
      %v2276 = vmul.f32 %v1303, %v2259
      %v2277 = vmul.f32 %v1407, %v2259
      %v2278 = vmul.f32 %v1391, %v2259
      %v2279 = vmul.f32 %v1306, %v2259
      %v2280 = vmul.f32 %v1408, %v2259
      %v2281 = vmul.f32 %v1392, %v2259
      %v2282 = vmul.f32 %v1309, %v2259
      %v2283 = vmul.f32 %v1409, %v2259
      %v2284 = vmul.f32 %v1393, %v2259
      %v2285 = vmul.f32 %v1312, %v2259
      %v2286 = vmul.f32 %v1410, %v2259
      %v2287 = vmul.f32 %v1394, %v2259
      %v2288 = vmul.f32 %v1315, %v2259
      %v2289 = vmul.f32 %v1411, %v2259
      %v2290 = vmul.f32 %v1395, %v2259
      %v2291 = vmul.f32 %v1318, %v2259
      %v2292 = vmul.f32 %v1412, %v2259
      %v2293 = vmul.f32 %v1396, %v2259
      %v2294 = vmul.f32 %v1321, %v2259
      %v2295 = vmul.f32 %v1413, %v2259
      %v2296 = vmul.f32 %v1397, %v2259
      %v2297 = vmul.f32 %v1324, %v2259
      %v2298 = vmul.f32 %v1414, %v2259
      %v2299 = vmul.f32 %v1398, %v2259
      %v2300 = vmul.f32 %v1327, %v2259
      %v2301 = vmul.f32 %v1415, %v2259
      %v2302 = vmul.f32 %v1399, %v2259
      %v2303 = vmul.f32 %v1330, %v2259
      %v2304 = vmul.f32 %v1416, %v2259
      %v2305 = vmul.f32 %v1400, %v2259
      %v2306 = vmul.f32 %v1333, %v2259
      %v2307 = vmul.f32 %v1417, %v2259
      %v2356 = vrot.slane %v2260, 2
      %v2357 = vrot.slane %v2261, 2
      %v2358 = vsel %vm1799, %v2356, %v2357
      %v2359 = vrot.slane %v2262, 2
      %v2360 = vsel %vm1799, %v2357, %v2359
      %v2361 = vrot.slane %v2263, 2
      %v2362 = vrot.slane %v2264, 2
      %v2363 = vsel %vm1799, %v2361, %v2362
      %v2364 = vrot.slane %v2265, 2
      %v2365 = vsel %vm1799, %v2362, %v2364
      %v2366 = vrot.slane %v2266, 2
      %v2367 = vrot.slane %v2267, 2
      %v2368 = vsel %vm1799, %v2366, %v2367
      %v2369 = vrot.slane %v2268, 2
      %v2370 = vsel %vm1799, %v2367, %v2369
      %v2371 = vrot.slane %v2269, 2
      %v2372 = vrot.slane %v2270, 2
      %v2373 = vsel %vm1799, %v2371, %v2372
      %v2374 = vrot.slane %v2271, 2
      %v2375 = vsel %vm1799, %v2372, %v2374
      %v2376 = vrot.slane %v2272, 2
      %v2377 = vrot.slane %v2273, 2
      %v2378 = vsel %vm1799, %v2376, %v2377
      %v2379 = vrot.slane %v2274, 2
      %v2380 = vsel %vm1799, %v2377, %v2379
      %v2381 = vrot.slane %v2275, 2
      %v2382 = vrot.slane %v2276, 2
      %v2383 = vsel %vm1799, %v2381, %v2382
      %v2384 = vrot.slane %v2277, 2
      %v2385 = vsel %vm1799, %v2382, %v2384
      %v2386 = vrot.slane %v2278, 2
      %v2387 = vrot.slane %v2279, 2
      %v2388 = vsel %vm1799, %v2386, %v2387
      %v2389 = vrot.slane %v2280, 2
      %v2390 = vsel %vm1799, %v2387, %v2389
      %v2391 = vrot.slane %v2281, 2
      %v2392 = vrot.slane %v2282, 2
      %v2393 = vsel %vm1799, %v2391, %v2392
      %v2394 = vrot.slane %v2283, 2
      %v2395 = vsel %vm1799, %v2392, %v2394
      %v2396 = vrot.slane %v2284, 2
      %v2397 = vrot.slane %v2285, 2
      %v2398 = vsel %vm1799, %v2396, %v2397
      %v2399 = vrot.slane %v2286, 2
      %v2400 = vsel %vm1799, %v2397, %v2399
      %v2401 = vrot.slane %v2287, 2
      %v2402 = vrot.slane %v2288, 2
      %v2403 = vsel %vm1799, %v2401, %v2402
      %v2404 = vrot.slane %v2289, 2
      %v2405 = vsel %vm1799, %v2402, %v2404
      %v2406 = vrot.slane %v2290, 2
      %v2407 = vrot.slane %v2291, 2
      %v2408 = vsel %vm1799, %v2406, %v2407
      %v2409 = vrot.slane %v2292, 2
      %v2410 = vsel %vm1799, %v2407, %v2409
      %v2411 = vrot.slane %v2293, 2
      %v2412 = vrot.slane %v2294, 2
      %v2413 = vsel %vm1799, %v2411, %v2412
      %v2414 = vrot.slane %v2295, 2
      %v2415 = vsel %vm1799, %v2412, %v2414
      %v2416 = vrot.slane %v2296, 2
      %v2417 = vrot.slane %v2297, 2
      %v2418 = vsel %vm1799, %v2416, %v2417
      %v2419 = vrot.slane %v2298, 2
      %v2420 = vsel %vm1799, %v2417, %v2419
      %v2421 = vrot.slane %v2299, 2
      %v2422 = vrot.slane %v2300, 2
      %v2423 = vsel %vm1799, %v2421, %v2422
      %v2424 = vrot.slane %v2301, 2
      %v2425 = vsel %vm1799, %v2422, %v2424
      %v2426 = vrot.slane %v2302, 2
      %v2427 = vrot.slane %v2303, 2
      %v2428 = vsel %vm1799, %v2426, %v2427
      %v2429 = vrot.slane %v2304, 2
      %v2430 = vsel %vm1799, %v2427, %v2429
      %v2431 = vrot.slane %v2305, 2
      %v2432 = vrot.slane %v2306, 2
      %v2433 = vsel %vm1799, %v2431, %v2432
      %v2434 = vrot.slane %v2307, 2
      %v2435 = vsel %vm1799, %v2432, %v2434
      %v2468 = vadd.f32 %v2224, %v2358
      %v2469 = vadd.f32 %v2225, %v2360
      %v2470 = vadd.f32 %v2226, %v2363
      %v2471 = vadd.f32 %v2227, %v2365
      %v2472 = vadd.f32 %v2228, %v2368
      %v2473 = vadd.f32 %v2229, %v2370
      %v2474 = vadd.f32 %v2230, %v2373
      %v2475 = vadd.f32 %v2231, %v2375
      %v2476 = vadd.f32 %v2232, %v2378
      %v2477 = vadd.f32 %v2233, %v2380
      %v2478 = vadd.f32 %v2234, %v2383
      %v2479 = vadd.f32 %v2235, %v2385
      %v2480 = vadd.f32 %v2236, %v2388
      %v2481 = vadd.f32 %v2237, %v2390
      %v2482 = vadd.f32 %v2238, %v2393
      %v2483 = vadd.f32 %v2239, %v2395
      %v2484 = vadd.f32 %v2240, %v2398
      %v2485 = vadd.f32 %v2241, %v2400
      %v2486 = vadd.f32 %v2242, %v2403
      %v2487 = vadd.f32 %v2243, %v2405
      %v2488 = vadd.f32 %v2244, %v2408
      %v2489 = vadd.f32 %v2245, %v2410
      %v2490 = vadd.f32 %v2246, %v2413
      %v2491 = vadd.f32 %v2247, %v2415
      %v2492 = vadd.f32 %v2248, %v2418
      %v2493 = vadd.f32 %v2249, %v2420
      %v2494 = vadd.f32 %v2250, %v2423
      %v2495 = vadd.f32 %v2251, %v2425
      %v2496 = vadd.f32 %v2252, %v2428
      %v2497 = vadd.f32 %v2253, %v2430
      %v2498 = vadd.f32 %v2254, %v2433
      %v2499 = vadd.f32 %v2255, %v2435
      %v2500 = vlaneseq
      %v2501 = vshrl.u32 %v2500, 7
      %v2502 = vsub.s32 6, %v2501
      %v2503 = vrot.slane %v231, %v2502
      %v2504 = vmul.f32 %v1386, %v2503
      %v2505 = vmul.f32 %v1291, %v2503
      %v2506 = vmul.f32 %v1387, %v2503
      %v2507 = vmul.f32 %v1294, %v2503
      %v2508 = vmul.f32 %v1388, %v2503
      %v2509 = vmul.f32 %v1297, %v2503
      %v2510 = vmul.f32 %v1389, %v2503
      %v2511 = vmul.f32 %v1300, %v2503
      %v2512 = vmul.f32 %v1390, %v2503
      %v2513 = vmul.f32 %v1303, %v2503
      %v2514 = vmul.f32 %v1391, %v2503
      %v2515 = vmul.f32 %v1306, %v2503
      %v2516 = vmul.f32 %v1392, %v2503
      %v2517 = vmul.f32 %v1309, %v2503
      %v2518 = vmul.f32 %v1393, %v2503
      %v2519 = vmul.f32 %v1312, %v2503
      %v2520 = vmul.f32 %v1394, %v2503
      %v2521 = vmul.f32 %v1315, %v2503
      %v2522 = vmul.f32 %v1395, %v2503
      %v2523 = vmul.f32 %v1318, %v2503
      %v2524 = vmul.f32 %v1396, %v2503
      %v2525 = vmul.f32 %v1321, %v2503
      %v2526 = vmul.f32 %v1397, %v2503
      %v2527 = vmul.f32 %v1324, %v2503
      %v2528 = vmul.f32 %v1398, %v2503
      %v2529 = vmul.f32 %v1327, %v2503
      %v2530 = vmul.f32 %v1399, %v2503
      %v2531 = vmul.f32 %v1330, %v2503
      %v2532 = vmul.f32 %v1400, %v2503
      %v2533 = vmul.f32 %v1333, %v2503
      %v2534 = vmul.f32 %v1384, %v2503
      %v2535 = vmul.f32 %v1285, %v2503
      %v2536 = vadd.f32 %v2468, %v2504
      %v2537 = vadd.f32 %v2469, %v2505
      %v2538 = vadd.f32 %v2470, %v2506
      %v2539 = vadd.f32 %v2471, %v2507
      %v2540 = vadd.f32 %v2472, %v2508
      %v2541 = vadd.f32 %v2473, %v2509
      %v2542 = vadd.f32 %v2474, %v2510
      %v2543 = vadd.f32 %v2475, %v2511
      %v2544 = vadd.f32 %v2476, %v2512
      %v2545 = vadd.f32 %v2477, %v2513
      %v2546 = vadd.f32 %v2478, %v2514
      %v2547 = vadd.f32 %v2479, %v2515
      %v2548 = vadd.f32 %v2480, %v2516
      %v2549 = vadd.f32 %v2481, %v2517
      %v2550 = vadd.f32 %v2482, %v2518
      %v2551 = vadd.f32 %v2483, %v2519
      %v2552 = vadd.f32 %v2484, %v2520
      %v2553 = vadd.f32 %v2485, %v2521
      %v2554 = vadd.f32 %v2486, %v2522
      %v2555 = vadd.f32 %v2487, %v2523
      %v2556 = vadd.f32 %v2488, %v2524
      %v2557 = vadd.f32 %v2489, %v2525
      %v2558 = vadd.f32 %v2490, %v2526
      %v2559 = vadd.f32 %v2491, %v2527
      %v2560 = vadd.f32 %v2492, %v2528
      %v2561 = vadd.f32 %v2493, %v2529
      %v2562 = vadd.f32 %v2494, %v2530
      %v2563 = vadd.f32 %v2495, %v2531
      %v2564 = vadd.f32 %v2496, %v2532
      %v2565 = vadd.f32 %v2497, %v2533
      %v2566 = vadd.f32 %v2498, %v2534
      %v2567 = vadd.f32 %v2499, %v2535
      %v2568 = vlaneseq
      %v2569 = vshrl.u32 %v2568, 7
      %v2570 = vsub.s32 7, %v2569
      %v2571 = vrot.slane %v231, %v2570
      %v2572 = vmul.f32 %v1386, %v2571
      %v2573 = vmul.f32 %v1291, %v2571
      %v2574 = vmul.f32 %v1403, %v2571
      %v2575 = vmul.f32 %v1387, %v2571
      %v2576 = vmul.f32 %v1294, %v2571
      %v2577 = vmul.f32 %v1404, %v2571
      %v2578 = vmul.f32 %v1388, %v2571
      %v2579 = vmul.f32 %v1297, %v2571
      %v2580 = vmul.f32 %v1405, %v2571
      %v2581 = vmul.f32 %v1389, %v2571
      %v2582 = vmul.f32 %v1300, %v2571
      %v2583 = vmul.f32 %v1406, %v2571
      %v2584 = vmul.f32 %v1390, %v2571
      %v2585 = vmul.f32 %v1303, %v2571
      %v2586 = vmul.f32 %v1407, %v2571
      %v2587 = vmul.f32 %v1391, %v2571
      %v2588 = vmul.f32 %v1306, %v2571
      %v2589 = vmul.f32 %v1408, %v2571
      %v2590 = vmul.f32 %v1392, %v2571
      %v2591 = vmul.f32 %v1309, %v2571
      %v2592 = vmul.f32 %v1409, %v2571
      %v2593 = vmul.f32 %v1393, %v2571
      %v2594 = vmul.f32 %v1312, %v2571
      %v2595 = vmul.f32 %v1410, %v2571
      %v2596 = vmul.f32 %v1394, %v2571
      %v2597 = vmul.f32 %v1315, %v2571
      %v2598 = vmul.f32 %v1411, %v2571
      %v2599 = vmul.f32 %v1395, %v2571
      %v2600 = vmul.f32 %v1318, %v2571
      %v2601 = vmul.f32 %v1412, %v2571
      %v2602 = vmul.f32 %v1396, %v2571
      %v2603 = vmul.f32 %v1321, %v2571
      %v2604 = vmul.f32 %v1413, %v2571
      %v2605 = vmul.f32 %v1397, %v2571
      %v2606 = vmul.f32 %v1324, %v2571
      %v2607 = vmul.f32 %v1414, %v2571
      %v2608 = vmul.f32 %v1398, %v2571
      %v2609 = vmul.f32 %v1327, %v2571
      %v2610 = vmul.f32 %v1415, %v2571
      %v2611 = vmul.f32 %v1399, %v2571
      %v2612 = vmul.f32 %v1330, %v2571
      %v2613 = vmul.f32 %v1416, %v2571
      %v2614 = vmul.f32 %v1400, %v2571
      %v2615 = vmul.f32 %v1333, %v2571
      %v2616 = vmul.f32 %v1417, %v2571
      %v2617 = vmul.f32 %v1384, %v2571
      %v2618 = vmul.f32 %v1285, %v2571
      %v2619 = vmul.f32 %v1401, %v2571
      %v2668 = vrot.slane %v2572, 1
      %v2669 = vrot.slane %v2573, 1
      %v2670 = vsel %vm1554, %v2668, %v2669
      %v2671 = vrot.slane %v2574, 1
      %v2672 = vsel %vm1554, %v2669, %v2671
      %v2673 = vrot.slane %v2575, 1
      %v2674 = vrot.slane %v2576, 1
      %v2675 = vsel %vm1554, %v2673, %v2674
      %v2676 = vrot.slane %v2577, 1
      %v2677 = vsel %vm1554, %v2674, %v2676
      %v2678 = vrot.slane %v2578, 1
      %v2679 = vrot.slane %v2579, 1
      %v2680 = vsel %vm1554, %v2678, %v2679
      %v2681 = vrot.slane %v2580, 1
      %v2682 = vsel %vm1554, %v2679, %v2681
      %v2683 = vrot.slane %v2581, 1
      %v2684 = vrot.slane %v2582, 1
      %v2685 = vsel %vm1554, %v2683, %v2684
      %v2686 = vrot.slane %v2583, 1
      %v2687 = vsel %vm1554, %v2684, %v2686
      %v2688 = vrot.slane %v2584, 1
      %v2689 = vrot.slane %v2585, 1
      %v2690 = vsel %vm1554, %v2688, %v2689
      %v2691 = vrot.slane %v2586, 1
      %v2692 = vsel %vm1554, %v2689, %v2691
      %v2693 = vrot.slane %v2587, 1
      %v2694 = vrot.slane %v2588, 1
      %v2695 = vsel %vm1554, %v2693, %v2694
      %v2696 = vrot.slane %v2589, 1
      %v2697 = vsel %vm1554, %v2694, %v2696
      %v2698 = vrot.slane %v2590, 1
      %v2699 = vrot.slane %v2591, 1
      %v2700 = vsel %vm1554, %v2698, %v2699
      %v2701 = vrot.slane %v2592, 1
      %v2702 = vsel %vm1554, %v2699, %v2701
      %v2703 = vrot.slane %v2593, 1
      %v2704 = vrot.slane %v2594, 1
      %v2705 = vsel %vm1554, %v2703, %v2704
      %v2706 = vrot.slane %v2595, 1
      %v2707 = vsel %vm1554, %v2704, %v2706
      %v2708 = vrot.slane %v2596, 1
      %v2709 = vrot.slane %v2597, 1
      %v2710 = vsel %vm1554, %v2708, %v2709
      %v2711 = vrot.slane %v2598, 1
      %v2712 = vsel %vm1554, %v2709, %v2711
      %v2713 = vrot.slane %v2599, 1
      %v2714 = vrot.slane %v2600, 1
      %v2715 = vsel %vm1554, %v2713, %v2714
      %v2716 = vrot.slane %v2601, 1
      %v2717 = vsel %vm1554, %v2714, %v2716
      %v2718 = vrot.slane %v2602, 1
      %v2719 = vrot.slane %v2603, 1
      %v2720 = vsel %vm1554, %v2718, %v2719
      %v2721 = vrot.slane %v2604, 1
      %v2722 = vsel %vm1554, %v2719, %v2721
      %v2723 = vrot.slane %v2605, 1
      %v2724 = vrot.slane %v2606, 1
      %v2725 = vsel %vm1554, %v2723, %v2724
      %v2726 = vrot.slane %v2607, 1
      %v2727 = vsel %vm1554, %v2724, %v2726
      %v2728 = vrot.slane %v2608, 1
      %v2729 = vrot.slane %v2609, 1
      %v2730 = vsel %vm1554, %v2728, %v2729
      %v2731 = vrot.slane %v2610, 1
      %v2732 = vsel %vm1554, %v2729, %v2731
      %v2733 = vrot.slane %v2611, 1
      %v2734 = vrot.slane %v2612, 1
      %v2735 = vsel %vm1554, %v2733, %v2734
      %v2736 = vrot.slane %v2613, 1
      %v2737 = vsel %vm1554, %v2734, %v2736
      %v2738 = vrot.slane %v2614, 1
      %v2739 = vrot.slane %v2615, 1
      %v2740 = vsel %vm1554, %v2738, %v2739
      %v2741 = vrot.slane %v2616, 1
      %v2742 = vsel %vm1554, %v2739, %v2741
      %v2743 = vrot.slane %v2617, 1
      %v2744 = vrot.slane %v2618, 1
      %v2745 = vsel %vm1554, %v2743, %v2744
      %v2746 = vrot.slane %v2619, 1
      %v2747 = vsel %vm1554, %v2744, %v2746
      %v2780 = vadd.f32 %v2536, %v2670
      %v2781 = vadd.f32 %v2537, %v2672
      %v2782 = vadd.f32 %v2538, %v2675
      %v2783 = vadd.f32 %v2539, %v2677
      %v2784 = vadd.f32 %v2540, %v2680
      %v2785 = vadd.f32 %v2541, %v2682
      %v2786 = vadd.f32 %v2542, %v2685
      %v2787 = vadd.f32 %v2543, %v2687
      %v2788 = vadd.f32 %v2544, %v2690
      %v2789 = vadd.f32 %v2545, %v2692
      %v2790 = vadd.f32 %v2546, %v2695
      %v2791 = vadd.f32 %v2547, %v2697
      %v2792 = vadd.f32 %v2548, %v2700
      %v2793 = vadd.f32 %v2549, %v2702
      %v2794 = vadd.f32 %v2550, %v2705
      %v2795 = vadd.f32 %v2551, %v2707
      %v2796 = vadd.f32 %v2552, %v2710
      %v2797 = vadd.f32 %v2553, %v2712
      %v2798 = vadd.f32 %v2554, %v2715
      %v2799 = vadd.f32 %v2555, %v2717
      %v2800 = vadd.f32 %v2556, %v2720
      %v2801 = vadd.f32 %v2557, %v2722
      %v2802 = vadd.f32 %v2558, %v2725
      %v2803 = vadd.f32 %v2559, %v2727
      %v2804 = vadd.f32 %v2560, %v2730
      %v2805 = vadd.f32 %v2561, %v2732
      %v2806 = vadd.f32 %v2562, %v2735
      %v2807 = vadd.f32 %v2563, %v2737
      %v2808 = vadd.f32 %v2564, %v2740
      %v2809 = vadd.f32 %v2565, %v2742
      %v2810 = vadd.f32 %v2566, %v2745
      %v2811 = vadd.f32 %v2567, %v2747
      %v2812 = vlaneseq
      %v2813 = vshrl.u32 %v2812, 7
      %v2814 = vsub.s32 0, %v2813
      %v2815 = vrot.slane %v232, %v2814
      %v2816 = vmul.f32 %v1386, %v2815
      %v2817 = vmul.f32 %v1291, %v2815
      %v2818 = vmul.f32 %v1403, %v2815
      %v2819 = vmul.f32 %v1387, %v2815
      %v2820 = vmul.f32 %v1294, %v2815
      %v2821 = vmul.f32 %v1404, %v2815
      %v2822 = vmul.f32 %v1388, %v2815
      %v2823 = vmul.f32 %v1297, %v2815
      %v2824 = vmul.f32 %v1405, %v2815
      %v2825 = vmul.f32 %v1389, %v2815
      %v2826 = vmul.f32 %v1300, %v2815
      %v2827 = vmul.f32 %v1406, %v2815
      %v2828 = vmul.f32 %v1390, %v2815
      %v2829 = vmul.f32 %v1303, %v2815
      %v2830 = vmul.f32 %v1407, %v2815
      %v2831 = vmul.f32 %v1391, %v2815
      %v2832 = vmul.f32 %v1306, %v2815
      %v2833 = vmul.f32 %v1408, %v2815
      %v2834 = vmul.f32 %v1392, %v2815
      %v2835 = vmul.f32 %v1309, %v2815
      %v2836 = vmul.f32 %v1409, %v2815
      %v2837 = vmul.f32 %v1393, %v2815
      %v2838 = vmul.f32 %v1312, %v2815
      %v2839 = vmul.f32 %v1410, %v2815
      %v2840 = vmul.f32 %v1394, %v2815
      %v2841 = vmul.f32 %v1315, %v2815
      %v2842 = vmul.f32 %v1411, %v2815
      %v2843 = vmul.f32 %v1395, %v2815
      %v2844 = vmul.f32 %v1318, %v2815
      %v2845 = vmul.f32 %v1412, %v2815
      %v2846 = vmul.f32 %v1396, %v2815
      %v2847 = vmul.f32 %v1321, %v2815
      %v2848 = vmul.f32 %v1413, %v2815
      %v2849 = vmul.f32 %v1397, %v2815
      %v2850 = vmul.f32 %v1324, %v2815
      %v2851 = vmul.f32 %v1414, %v2815
      %v2852 = vmul.f32 %v1398, %v2815
      %v2853 = vmul.f32 %v1327, %v2815
      %v2854 = vmul.f32 %v1415, %v2815
      %v2855 = vmul.f32 %v1399, %v2815
      %v2856 = vmul.f32 %v1330, %v2815
      %v2857 = vmul.f32 %v1416, %v2815
      %v2858 = vmul.f32 %v1400, %v2815
      %v2859 = vmul.f32 %v1333, %v2815
      %v2860 = vmul.f32 %v1417, %v2815
      %v2861 = vmul.f32 %v1384, %v2815
      %v2862 = vmul.f32 %v1285, %v2815
      %v2863 = vmul.f32 %v1401, %v2815
      %v2912 = vrot.slane %v2816, 2
      %v2913 = vrot.slane %v2817, 2
      %v2914 = vsel %vm1799, %v2912, %v2913
      %v2915 = vrot.slane %v2818, 2
      %v2916 = vsel %vm1799, %v2913, %v2915
      %v2917 = vrot.slane %v2819, 2
      %v2918 = vrot.slane %v2820, 2
      %v2919 = vsel %vm1799, %v2917, %v2918
      %v2920 = vrot.slane %v2821, 2
      %v2921 = vsel %vm1799, %v2918, %v2920
      %v2922 = vrot.slane %v2822, 2
      %v2923 = vrot.slane %v2823, 2
      %v2924 = vsel %vm1799, %v2922, %v2923
      %v2925 = vrot.slane %v2824, 2
      %v2926 = vsel %vm1799, %v2923, %v2925
      %v2927 = vrot.slane %v2825, 2
      %v2928 = vrot.slane %v2826, 2
      %v2929 = vsel %vm1799, %v2927, %v2928
      %v2930 = vrot.slane %v2827, 2
      %v2931 = vsel %vm1799, %v2928, %v2930
      %v2932 = vrot.slane %v2828, 2
      %v2933 = vrot.slane %v2829, 2
      %v2934 = vsel %vm1799, %v2932, %v2933
      %v2935 = vrot.slane %v2830, 2
      %v2936 = vsel %vm1799, %v2933, %v2935
      %v2937 = vrot.slane %v2831, 2
      %v2938 = vrot.slane %v2832, 2
      %v2939 = vsel %vm1799, %v2937, %v2938
      %v2940 = vrot.slane %v2833, 2
      %v2941 = vsel %vm1799, %v2938, %v2940
      %v2942 = vrot.slane %v2834, 2
      %v2943 = vrot.slane %v2835, 2
      %v2944 = vsel %vm1799, %v2942, %v2943
      %v2945 = vrot.slane %v2836, 2
      %v2946 = vsel %vm1799, %v2943, %v2945
      %v2947 = vrot.slane %v2837, 2
      %v2948 = vrot.slane %v2838, 2
      %v2949 = vsel %vm1799, %v2947, %v2948
      %v2950 = vrot.slane %v2839, 2
      %v2951 = vsel %vm1799, %v2948, %v2950
      %v2952 = vrot.slane %v2840, 2
      %v2953 = vrot.slane %v2841, 2
      %v2954 = vsel %vm1799, %v2952, %v2953
      %v2955 = vrot.slane %v2842, 2
      %v2956 = vsel %vm1799, %v2953, %v2955
      %v2957 = vrot.slane %v2843, 2
      %v2958 = vrot.slane %v2844, 2
      %v2959 = vsel %vm1799, %v2957, %v2958
      %v2960 = vrot.slane %v2845, 2
      %v2961 = vsel %vm1799, %v2958, %v2960
      %v2962 = vrot.slane %v2846, 2
      %v2963 = vrot.slane %v2847, 2
      %v2964 = vsel %vm1799, %v2962, %v2963
      %v2965 = vrot.slane %v2848, 2
      %v2966 = vsel %vm1799, %v2963, %v2965
      %v2967 = vrot.slane %v2849, 2
      %v2968 = vrot.slane %v2850, 2
      %v2969 = vsel %vm1799, %v2967, %v2968
      %v2970 = vrot.slane %v2851, 2
      %v2971 = vsel %vm1799, %v2968, %v2970
      %v2972 = vrot.slane %v2852, 2
      %v2973 = vrot.slane %v2853, 2
      %v2974 = vsel %vm1799, %v2972, %v2973
      %v2975 = vrot.slane %v2854, 2
      %v2976 = vsel %vm1799, %v2973, %v2975
      %v2977 = vrot.slane %v2855, 2
      %v2978 = vrot.slane %v2856, 2
      %v2979 = vsel %vm1799, %v2977, %v2978
      %v2980 = vrot.slane %v2857, 2
      %v2981 = vsel %vm1799, %v2978, %v2980
      %v2982 = vrot.slane %v2858, 2
      %v2983 = vrot.slane %v2859, 2
      %v2984 = vsel %vm1799, %v2982, %v2983
      %v2985 = vrot.slane %v2860, 2
      %v2986 = vsel %vm1799, %v2983, %v2985
      %v2987 = vrot.slane %v2861, 2
      %v2988 = vrot.slane %v2862, 2
      %v2989 = vsel %vm1799, %v2987, %v2988
      %v2990 = vrot.slane %v2863, 2
      %v2991 = vsel %vm1799, %v2988, %v2990
      %v3024 = vadd.f32 %v2780, %v2914
      %v3025 = vadd.f32 %v2781, %v2916
      %v3026 = vadd.f32 %v2782, %v2919
      %v3027 = vadd.f32 %v2783, %v2921
      %v3028 = vadd.f32 %v2784, %v2924
      %v3029 = vadd.f32 %v2785, %v2926
      %v3030 = vadd.f32 %v2786, %v2929
      %v3031 = vadd.f32 %v2787, %v2931
      %v3032 = vadd.f32 %v2788, %v2934
      %v3033 = vadd.f32 %v2789, %v2936
      %v3034 = vadd.f32 %v2790, %v2939
      %v3035 = vadd.f32 %v2791, %v2941
      %v3036 = vadd.f32 %v2792, %v2944
      %v3037 = vadd.f32 %v2793, %v2946
      %v3038 = vadd.f32 %v2794, %v2949
      %v3039 = vadd.f32 %v2795, %v2951
      %v3040 = vadd.f32 %v2796, %v2954
      %v3041 = vadd.f32 %v2797, %v2956
      %v3042 = vadd.f32 %v2798, %v2959
      %v3043 = vadd.f32 %v2799, %v2961
      %v3044 = vadd.f32 %v2800, %v2964
      %v3045 = vadd.f32 %v2801, %v2966
      %v3046 = vadd.f32 %v2802, %v2969
      %v3047 = vadd.f32 %v2803, %v2971
      %v3048 = vadd.f32 %v2804, %v2974
      %v3049 = vadd.f32 %v2805, %v2976
      %v3050 = vadd.f32 %v2806, %v2979
      %v3051 = vadd.f32 %v2807, %v2981
      %v3052 = vadd.f32 %v2808, %v2984
      %v3053 = vadd.f32 %v2809, %v2986
      %v3054 = vadd.f32 %v2810, %v2989
      %v3055 = vadd.f32 %v2811, %v2991
      %v3056 = vlaneseq
      %v3057 = vshrl.u32 %v3056, 7
      %v3058 = vsub.s32 1, %v3057
      %v3059 = vrot.slane %v232, %v3058
      %v3060 = vadd.f32 %v3024, %v3059
      %v3061 = vadd.f32 %v3025, %v3059
      %v3062 = vadd.f32 %v3026, %v3059
      %v3063 = vadd.f32 %v3027, %v3059
      %v3064 = vadd.f32 %v3028, %v3059
      %v3065 = vadd.f32 %v3029, %v3059
      %v3066 = vadd.f32 %v3030, %v3059
      %v3067 = vadd.f32 %v3031, %v3059
      %v3068 = vadd.f32 %v3032, %v3059
      %v3069 = vadd.f32 %v3033, %v3059
      %v3070 = vadd.f32 %v3034, %v3059
      %v3071 = vadd.f32 %v3035, %v3059
      %v3072 = vadd.f32 %v3036, %v3059
      %v3073 = vadd.f32 %v3037, %v3059
      %v3074 = vadd.f32 %v3038, %v3059
      %v3075 = vadd.f32 %v3039, %v3059
      %v3076 = vadd.f32 %v3040, %v3059
      %v3077 = vadd.f32 %v3041, %v3059
      %v3078 = vadd.f32 %v3042, %v3059
      %v3079 = vadd.f32 %v3043, %v3059
      %v3080 = vadd.f32 %v3044, %v3059
      %v3081 = vadd.f32 %v3045, %v3059
      %v3082 = vadd.f32 %v3046, %v3059
      %v3083 = vadd.f32 %v3047, %v3059
      %v3084 = vadd.f32 %v3048, %v3059
      %v3085 = vadd.f32 %v3049, %v3059
      %v3086 = vadd.f32 %v3050, %v3059
      %v3087 = vadd.f32 %v3051, %v3059
      %v3088 = vadd.f32 %v3052, %v3059
      %v3089 = vadd.f32 %v3053, %v3059
      %v3090 = vadd.f32 %v3054, %v3059
      %v3091 = vadd.f32 %v3055, %v3059
      %v3092 = vxor.u32 %v3060, 2147483648
      %v3093 = vxor.u32 %v3061, 2147483648
      %v3094 = vxor.u32 %v3062, 2147483648
      %v3095 = vxor.u32 %v3063, 2147483648
      %v3096 = vxor.u32 %v3064, 2147483648
      %v3097 = vxor.u32 %v3065, 2147483648
      %v3098 = vxor.u32 %v3066, 2147483648
      %v3099 = vxor.u32 %v3067, 2147483648
      %v3100 = vxor.u32 %v3068, 2147483648
      %v3101 = vxor.u32 %v3069, 2147483648
      %v3102 = vxor.u32 %v3070, 2147483648
      %v3103 = vxor.u32 %v3071, 2147483648
      %v3104 = vxor.u32 %v3072, 2147483648
      %v3105 = vxor.u32 %v3073, 2147483648
      %v3106 = vxor.u32 %v3074, 2147483648
      %v3107 = vxor.u32 %v3075, 2147483648
      %v3108 = vxor.u32 %v3076, 2147483648
      %v3109 = vxor.u32 %v3077, 2147483648
      %v3110 = vxor.u32 %v3078, 2147483648
      %v3111 = vxor.u32 %v3079, 2147483648
      %v3112 = vxor.u32 %v3080, 2147483648
      %v3113 = vxor.u32 %v3081, 2147483648
      %v3114 = vxor.u32 %v3082, 2147483648
      %v3115 = vxor.u32 %v3083, 2147483648
      %v3116 = vxor.u32 %v3084, 2147483648
      %v3117 = vxor.u32 %v3085, 2147483648
      %v3118 = vxor.u32 %v3086, 2147483648
      %v3119 = vxor.u32 %v3087, 2147483648
      %v3120 = vxor.u32 %v3088, 2147483648
      %v3121 = vxor.u32 %v3089, 2147483648
      %v3122 = vxor.u32 %v3090, 2147483648
      %v3123 = vxor.u32 %v3091, 2147483648
      %v3124 = vmul.f32 %v3092, 1.442695
      %v3125 = vpow.pop %v3124
      %v3126 = vmul.f32 %v3093, 1.442695
      %v3127 = vpow.pop %v3126
      %v3128 = vmul.f32 %v3094, 1.442695
      %v3129 = vpow.pop %v3128
      %v3130 = vmul.f32 %v3095, 1.442695
      %v3131 = vpow.pop %v3130
      %v3132 = vmul.f32 %v3096, 1.442695
      %v3133 = vpow.pop %v3132
      %v3134 = vmul.f32 %v3097, 1.442695
      %v3135 = vpow.pop %v3134
      %v3136 = vmul.f32 %v3098, 1.442695
      %v3137 = vpow.pop %v3136
      %v3138 = vmul.f32 %v3099, 1.442695
      %v3139 = vpow.pop %v3138
      %v3140 = vmul.f32 %v3100, 1.442695
      %v3141 = vpow.pop %v3140
      %v3142 = vmul.f32 %v3101, 1.442695
      %v3143 = vpow.pop %v3142
      %v3144 = vmul.f32 %v3102, 1.442695
      %v3145 = vpow.pop %v3144
      %v3146 = vmul.f32 %v3103, 1.442695
      %v3147 = vpow.pop %v3146
      %v3148 = vmul.f32 %v3104, 1.442695
      %v3149 = vpow.pop %v3148
      %v3150 = vmul.f32 %v3105, 1.442695
      %v3151 = vpow.pop %v3150
      %v3152 = vmul.f32 %v3106, 1.442695
      %v3153 = vpow.pop %v3152
      %v3154 = vmul.f32 %v3107, 1.442695
      %v3155 = vpow.pop %v3154
      %v3156 = vmul.f32 %v3108, 1.442695
      %v3157 = vpow.pop %v3156
      %v3158 = vmul.f32 %v3109, 1.442695
      %v3159 = vpow.pop %v3158
      %v3160 = vmul.f32 %v3110, 1.442695
      %v3161 = vpow.pop %v3160
      %v3162 = vmul.f32 %v3111, 1.442695
      %v3163 = vpow.pop %v3162
      %v3164 = vmul.f32 %v3112, 1.442695
      %v3165 = vpow.pop %v3164
      %v3166 = vmul.f32 %v3113, 1.442695
      %v3167 = vpow.pop %v3166
      %v3168 = vmul.f32 %v3114, 1.442695
      %v3169 = vpow.pop %v3168
      %v3170 = vmul.f32 %v3115, 1.442695
      %v3171 = vpow.pop %v3170
      %v3172 = vmul.f32 %v3116, 1.442695
      %v3173 = vpow.pop %v3172
      %v3174 = vmul.f32 %v3117, 1.442695
      %v3175 = vpow.pop %v3174
      %v3176 = vmul.f32 %v3118, 1.442695
      %v3177 = vpow.pop %v3176
      %v3178 = vmul.f32 %v3119, 1.442695
      %v3179 = vpow.pop %v3178
      %v3180 = vmul.f32 %v3120, 1.442695
      %v3181 = vpow.pop %v3180
      %v3182 = vmul.f32 %v3121, 1.442695
      %v3183 = vpow.pop %v3182
      %v3184 = vmul.f32 %v3122, 1.442695
      %v3185 = vpow.pop %v3184
      %v3186 = vmul.f32 %v3123, 1.442695
      %v3187 = vpow.pop %v3186
      %v3188 = vadd.f32 %v3125, 1.0
      %v3189 = vadd.f32 %v3127, 1.0
      %v3190 = vadd.f32 %v3129, 1.0
      %v3191 = vadd.f32 %v3131, 1.0
      %v3192 = vadd.f32 %v3133, 1.0
      %v3193 = vadd.f32 %v3135, 1.0
      %v3194 = vadd.f32 %v3137, 1.0
      %v3195 = vadd.f32 %v3139, 1.0
      %v3196 = vadd.f32 %v3141, 1.0
      %v3197 = vadd.f32 %v3143, 1.0
      %v3198 = vadd.f32 %v3145, 1.0
      %v3199 = vadd.f32 %v3147, 1.0
      %v3200 = vadd.f32 %v3149, 1.0
      %v3201 = vadd.f32 %v3151, 1.0
      %v3202 = vadd.f32 %v3153, 1.0
      %v3203 = vadd.f32 %v3155, 1.0
      %v3204 = vadd.f32 %v3157, 1.0
      %v3205 = vadd.f32 %v3159, 1.0
      %v3206 = vadd.f32 %v3161, 1.0
      %v3207 = vadd.f32 %v3163, 1.0
      %v3208 = vadd.f32 %v3165, 1.0
      %v3209 = vadd.f32 %v3167, 1.0
      %v3210 = vadd.f32 %v3169, 1.0
      %v3211 = vadd.f32 %v3171, 1.0
      %v3212 = vadd.f32 %v3173, 1.0
      %v3213 = vadd.f32 %v3175, 1.0
      %v3214 = vadd.f32 %v3177, 1.0
      %v3215 = vadd.f32 %v3179, 1.0
      %v3216 = vadd.f32 %v3181, 1.0
      %v3217 = vadd.f32 %v3183, 1.0
      %v3218 = vadd.f32 %v3185, 1.0
      %v3219 = vadd.f32 %v3187, 1.0
      %v3220 = vrcp.pop %v3188
      %v3221 = vmul.f32 1.0, %v3220
      %v3222 = vrcp.pop %v3189
      %v3223 = vmul.f32 1.0, %v3222
      %v3224 = vrcp.pop %v3190
      %v3225 = vmul.f32 1.0, %v3224
      %v3226 = vrcp.pop %v3191
      %v3227 = vmul.f32 1.0, %v3226
      %v3228 = vrcp.pop %v3192
      %v3229 = vmul.f32 1.0, %v3228
      %v3230 = vrcp.pop %v3193
      %v3231 = vmul.f32 1.0, %v3230
      %v3232 = vrcp.pop %v3194
      %v3233 = vmul.f32 1.0, %v3232
      %v3234 = vrcp.pop %v3195
      %v3235 = vmul.f32 1.0, %v3234
      %v3236 = vrcp.pop %v3196
      %v3237 = vmul.f32 1.0, %v3236
      %v3238 = vrcp.pop %v3197
      %v3239 = vmul.f32 1.0, %v3238
      %v3240 = vrcp.pop %v3198
      %v3241 = vmul.f32 1.0, %v3240
      %v3242 = vrcp.pop %v3199
      %v3243 = vmul.f32 1.0, %v3242
      %v3244 = vrcp.pop %v3200
      %v3245 = vmul.f32 1.0, %v3244
      %v3246 = vrcp.pop %v3201
      %v3247 = vmul.f32 1.0, %v3246
      %v3248 = vrcp.pop %v3202
      %v3249 = vmul.f32 1.0, %v3248
      %v3250 = vrcp.pop %v3203
      %v3251 = vmul.f32 1.0, %v3250
      %v3252 = vrcp.pop %v3204
      %v3253 = vmul.f32 1.0, %v3252
      %v3254 = vrcp.pop %v3205
      %v3255 = vmul.f32 1.0, %v3254
      %v3256 = vrcp.pop %v3206
      %v3257 = vmul.f32 1.0, %v3256
      %v3258 = vrcp.pop %v3207
      %v3259 = vmul.f32 1.0, %v3258
      %v3260 = vrcp.pop %v3208
      %v3261 = vmul.f32 1.0, %v3260
      %v3262 = vrcp.pop %v3209
      %v3263 = vmul.f32 1.0, %v3262
      %v3264 = vrcp.pop %v3210
      %v3265 = vmul.f32 1.0, %v3264
      %v3266 = vrcp.pop %v3211
      %v3267 = vmul.f32 1.0, %v3266
      %v3268 = vrcp.pop %v3212
      %v3269 = vmul.f32 1.0, %v3268
      %v3270 = vrcp.pop %v3213
      %v3271 = vmul.f32 1.0, %v3270
      %v3272 = vrcp.pop %v3214
      %v3273 = vmul.f32 1.0, %v3272
      %v3274 = vrcp.pop %v3215
      %v3275 = vmul.f32 1.0, %v3274
      %v3276 = vrcp.pop %v3216
      %v3277 = vmul.f32 1.0, %v3276
      %v3278 = vrcp.pop %v3217
      %v3279 = vmul.f32 1.0, %v3278
      %v3280 = vrcp.pop %v3218
      %v3281 = vmul.f32 1.0, %v3280
      %v3282 = vrcp.pop %v3219
      %v3283 = vmul.f32 1.0, %v3282
      %v3284 = vmul.f32 %v3060, %v3221
      %v3285 = vmul.f32 %v3061, %v3223
      %v3286 = vmul.f32 %v3062, %v3225
      %v3287 = vmul.f32 %v3063, %v3227
      %v3288 = vmul.f32 %v3064, %v3229
      %v3289 = vmul.f32 %v3065, %v3231
      %v3290 = vmul.f32 %v3066, %v3233
      %v3291 = vmul.f32 %v3067, %v3235
      %v3292 = vmul.f32 %v3068, %v3237
      %v3293 = vmul.f32 %v3069, %v3239
      %v3294 = vmul.f32 %v3070, %v3241
      %v3295 = vmul.f32 %v3071, %v3243
      %v3296 = vmul.f32 %v3072, %v3245
      %v3297 = vmul.f32 %v3073, %v3247
      %v3298 = vmul.f32 %v3074, %v3249
      %v3299 = vmul.f32 %v3075, %v3251
      %v3300 = vmul.f32 %v3076, %v3253
      %v3301 = vmul.f32 %v3077, %v3255
      %v3302 = vmul.f32 %v3078, %v3257
      %v3303 = vmul.f32 %v3079, %v3259
      %v3304 = vmul.f32 %v3080, %v3261
      %v3305 = vmul.f32 %v3081, %v3263
      %v3306 = vmul.f32 %v3082, %v3265
      %v3307 = vmul.f32 %v3083, %v3267
      %v3308 = vmul.f32 %v3084, %v3269
      %v3309 = vmul.f32 %v3085, %v3271
      %v3310 = vmul.f32 %v3086, %v3273
      %v3311 = vmul.f32 %v3087, %v3275
      %v3312 = vmul.f32 %v3088, %v3277
      %v3313 = vmul.f32 %v3089, %v3279
      %v3314 = vmul.f32 %v3090, %v3281
      %v3315 = vmul.f32 %v3091, %v3283
      %v3316 = vpack.c.bf16 %v3285, %v3284
      %v3317 = vpack.c.bf16 %v3287, %v3286
      %v3318 = vpack.c.bf16 %v3289, %v3288
      %v3319 = vpack.c.bf16 %v3291, %v3290
      %v3320 = vpack.c.bf16 %v3293, %v3292
      %v3321 = vpack.c.bf16 %v3295, %v3294
      %v3322 = vpack.c.bf16 %v3297, %v3296
      %v3323 = vpack.c.bf16 %v3299, %v3298
      %v3324 = vpack.c.bf16 %v3301, %v3300
      %v3325 = vpack.c.bf16 %v3303, %v3302
      %v3326 = vpack.c.bf16 %v3305, %v3304
      %v3327 = vpack.c.bf16 %v3307, %v3306
      %v3328 = vpack.c.bf16 %v3309, %v3308
      %v3329 = vpack.c.bf16 %v3311, %v3310
      %v3330 = vpack.c.bf16 %v3313, %v3312
      %v3331 = vpack.c.bf16 %v3315, %v3314
      %v3332 = vld [vmem:[%s2] sm:$0xf]
      %v3333 = vld [vmem:[%s2 + $0x4] sm:$0xf]
      %v3334 = vld [vmem:[%s2 + $0x8] sm:$0xf]
      %v3335 = vld [vmem:[%s2 + $0xc] sm:$0xf]
      %v3336 = vld [vmem:[%s2 + $0x10] sm:$0xf]
      %v3337 = vld [vmem:[%s2 + $0x14] sm:$0xf]
      %v3338 = vld [vmem:[%s2 + $0x18] sm:$0xf]
      %v3339 = vld [vmem:[%s2 + $0x1c] sm:$0xf]
      %v3340 = vld [vmem:[%s2 + $0x20] sm:$0xf]
      %v3341 = vld [vmem:[%s2 + $0x24] sm:$0xf]
      %v3342 = vld [vmem:[%s2 + $0x28] sm:$0xf]
      %v3343 = vld [vmem:[%s2 + $0x2c] sm:$0xf]
      %v3344 = vld [vmem:[%s2 + $0x30] sm:$0xf]
      %v3345 = vld [vmem:[%s2 + $0x34] sm:$0xf]
      %v3346 = vld [vmem:[%s2 + $0x38] sm:$0xf]
      %v3347 = vld [vmem:[%s2 + $0x3c] sm:$0xf]
      %v3348 = vlaneseq
      %v3349 = vshrl.u32 %v3348, 7
      %v3350 = vsub.s32 2, %v3349
      %v3351 = vrot.slane %v232, %v3350
      %v3368 = vunpack.c.l.b16 %v3332
      %v3369 = vunpack.c.l.b16 %v3333
      %v3370 = vunpack.c.l.b16 %v3334
      %v3371 = vunpack.c.l.b16 %v3335
      %v3372 = vunpack.c.l.b16 %v3336
      %v3373 = vunpack.c.l.b16 %v3337
      %v3374 = vunpack.c.l.b16 %v3338
      %v3375 = vunpack.c.l.b16 %v3339
      %v3376 = vunpack.c.l.b16 %v3340
      %v3377 = vunpack.c.l.b16 %v3341
      %v3378 = vunpack.c.l.b16 %v3342
      %v3379 = vunpack.c.l.b16 %v3343
      %v3380 = vunpack.c.l.b16 %v3344
      %v3381 = vunpack.c.l.b16 %v3345
      %v3382 = vunpack.c.l.b16 %v3346
      %v3383 = vunpack.c.l.b16 %v3347
      %v3384 = vpack.c.b16 %v3369, %v3368
      %v3385 = vpack.c.b16 %v3371, %v3370
      %v3386 = vpack.c.b16 %v3373, %v3372
      %v3387 = vpack.c.b16 %v3375, %v3374
      %v3388 = vpack.c.b16 %v3377, %v3376
      %v3389 = vpack.c.b16 %v3379, %v3378
      %v3390 = vpack.c.b16 %v3381, %v3380
      %v3391 = vpack.c.b16 %v3383, %v3382
      %3400 = vmatprep.subr.bf16.mxu0 0
      %3401 = vmatpush1.bf16.msra.mxu0 %v3391
      %3402 = vmatprep.subr.bf16.mxu0 0
      %3403 = vmatpush1.bf16.msra.mxu0 %v3390
      %3404 = vmatprep.subr.bf16.mxu0 0
      %3405 = vmatpush1.bf16.msra.mxu0 %v3389
      %3406 = vmatprep.subr.bf16.mxu0 0
      %3407 = vmatpush1.bf16.msra.mxu0 %v3388
      %3408 = vmatprep.subr.bf16.mxu0 0
      %3409 = vmatpush1.bf16.msra.mxu0 %v3387
      %3410 = vmatprep.subr.bf16.mxu0 0
      %3411 = vmatpush1.bf16.msra.mxu0 %v3386
      %3412 = vmatprep.subr.bf16.mxu0 0
      %3413 = vmatpush1.bf16.msra.mxu0 %v3385
      %3414 = vmatprep.subr.bf16.mxu0 0
      %3415 = vmatpush1.bf16.msra.mxu0 %v3384
      %3416 = vmatprep.subr.bf16.mxu0 0
      %3417 = vmatpush2.bf16.msra.mxu0 0
      %3418 = vmatprep.subr.bf16.mxu0 0
      %3419 = vmatpush2.bf16.msra.mxu0 0
      %3420 = vmatprep.subr.bf16.mxu0 0
      %3421 = vmatpush2.bf16.msra.mxu0 0
      %3422 = vmatprep.subr.bf16.mxu0 0
      %3423 = vmatpush2.bf16.msra.mxu0 0
      %3424 = vmatprep.subr.bf16.mxu0 0
      %3425 = vmatpush2.bf16.msra.mxu0 0
      %3426 = vmatprep.subr.bf16.mxu0 0
      %3427 = vmatpush2.bf16.msra.mxu0 0
      %3428 = vmatprep.subr.bf16.mxu0 0
      %3429 = vmatpush2.bf16.msra.mxu0 0
      %3430 = vmatprep.subr.bf16.mxu0 0
      %3431 = vmatpush2.bf16.msra.mxu0 0
      %3432 = vmatprep.mubr.bf16.mxu0 0
      %3433 = vmatmul.mubr.bf16.gmra.mxu0 %v3316
      %v3434 = vpop.f32.mrf.mxu0
      %v3435 = vadd.f32 %v3351, %v3434
      %v3436 = vpop.f32.mrf.mxu0
      %v3437 = vpop.f32.mrf.mxu0
      %v3438 = vadd.f32 %v3351, %v3437
      %v3439 = vpop.f32.mrf.mxu0
      %3440 = vmatprep.mubr.bf16.mxu0 0
      %3441 = vmatmul.mubr.bf16.gmra.mxu0 %v3317
      %v3442 = vpop.f32.mrf.mxu0
      %v3443 = vadd.f32 %v3351, %v3442
      %v3444 = vpop.f32.mrf.mxu0
      %v3445 = vpop.f32.mrf.mxu0
      %v3446 = vadd.f32 %v3351, %v3445
      %v3447 = vpop.f32.mrf.mxu0
      %3448 = vmatprep.mubr.bf16.mxu0 0
      %3449 = vmatmul.mubr.bf16.gmra.mxu0 %v3318
      %v3450 = vpop.f32.mrf.mxu0
      %v3451 = vadd.f32 %v3351, %v3450
      %v3452 = vpop.f32.mrf.mxu0
      %v3453 = vpop.f32.mrf.mxu0
      %v3454 = vadd.f32 %v3351, %v3453
      %v3455 = vpop.f32.mrf.mxu0
      %3456 = vmatprep.mubr.bf16.mxu0 0
      %3457 = vmatmul.mubr.bf16.gmra.mxu0 %v3319
      %v3458 = vpop.f32.mrf.mxu0
      %v3459 = vadd.f32 %v3351, %v3458
      %v3460 = vpop.f32.mrf.mxu0
      %v3461 = vpop.f32.mrf.mxu0
      %v3462 = vadd.f32 %v3351, %v3461
      %v3463 = vpop.f32.mrf.mxu0
      %3464 = vmatprep.mubr.bf16.mxu0 0
      %3465 = vmatmul.mubr.bf16.gmra.mxu0 %v3320
      %v3466 = vpop.f32.mrf.mxu0
      %v3467 = vadd.f32 %v3351, %v3466
      %v3468 = vpop.f32.mrf.mxu0
      %v3469 = vpop.f32.mrf.mxu0
      %v3470 = vadd.f32 %v3351, %v3469
      %v3471 = vpop.f32.mrf.mxu0
      %3472 = vmatprep.mubr.bf16.mxu0 0
      %3473 = vmatmul.mubr.bf16.gmra.mxu0 %v3321
      %v3474 = vpop.f32.mrf.mxu0
      %v3475 = vadd.f32 %v3351, %v3474
      %v3476 = vpop.f32.mrf.mxu0
      %v3477 = vpop.f32.mrf.mxu0
      %v3478 = vadd.f32 %v3351, %v3477
      %v3479 = vpop.f32.mrf.mxu0
      %3480 = vmatprep.mubr.bf16.mxu0 0
      %3481 = vmatmul.mubr.bf16.gmra.mxu0 %v3322
      %v3482 = vpop.f32.mrf.mxu0
      %v3483 = vadd.f32 %v3351, %v3482
      %v3484 = vpop.f32.mrf.mxu0
      %v3485 = vpop.f32.mrf.mxu0
      %v3486 = vadd.f32 %v3351, %v3485
      %v3487 = vpop.f32.mrf.mxu0
      %3488 = vmatprep.mubr.bf16.mxu0 0
      %3489 = vmatmul.mubr.bf16.gmra.mxu0 %v3323
      %v3490 = vpop.f32.mrf.mxu0
      %v3491 = vadd.f32 %v3351, %v3490
      %v3492 = vpop.f32.mrf.mxu0
      %v3493 = vpop.f32.mrf.mxu0
      %v3494 = vadd.f32 %v3351, %v3493
      %v3495 = vpop.f32.mrf.mxu0
      %3496 = vmatprep.mubr.bf16.mxu0 0
      %3497 = vmatmul.mubr.bf16.gmra.mxu0 %v3324
      %v3498 = vpop.f32.mrf.mxu0
      %v3499 = vadd.f32 %v3351, %v3498
      %v3500 = vpop.f32.mrf.mxu0
      %v3501 = vpop.f32.mrf.mxu0
      %v3502 = vadd.f32 %v3351, %v3501
      %v3503 = vpop.f32.mrf.mxu0
      %3504 = vmatprep.mubr.bf16.mxu0 0
      %3505 = vmatmul.mubr.bf16.gmra.mxu0 %v3325
      %v3506 = vpop.f32.mrf.mxu0
      %v3507 = vadd.f32 %v3351, %v3506
      %v3508 = vpop.f32.mrf.mxu0
      %v3509 = vpop.f32.mrf.mxu0
      %v3510 = vadd.f32 %v3351, %v3509
      %v3511 = vpop.f32.mrf.mxu0
      %3512 = vmatprep.mubr.bf16.mxu0 0
      %3513 = vmatmul.mubr.bf16.gmra.mxu0 %v3326
      %v3514 = vpop.f32.mrf.mxu0
      %v3515 = vadd.f32 %v3351, %v3514
      %v3516 = vpop.f32.mrf.mxu0
      %v3517 = vpop.f32.mrf.mxu0
      %v3518 = vadd.f32 %v3351, %v3517
      %v3519 = vpop.f32.mrf.mxu0
      %3520 = vmatprep.mubr.bf16.mxu0 0
      %3521 = vmatmul.mubr.bf16.gmra.mxu0 %v3327
      %v3522 = vpop.f32.mrf.mxu0
      %v3523 = vadd.f32 %v3351, %v3522
      %v3524 = vpop.f32.mrf.mxu0
      %v3525 = vpop.f32.mrf.mxu0
      %v3526 = vadd.f32 %v3351, %v3525
      %v3527 = vpop.f32.mrf.mxu0
      %3528 = vmatprep.mubr.bf16.mxu0 0
      %3529 = vmatmul.mubr.bf16.gmra.mxu0 %v3328
      %v3530 = vpop.f32.mrf.mxu0
      %v3531 = vadd.f32 %v3351, %v3530
      %v3532 = vpop.f32.mrf.mxu0
      %v3533 = vpop.f32.mrf.mxu0
      %v3534 = vadd.f32 %v3351, %v3533
      %v3535 = vpop.f32.mrf.mxu0
      %3536 = vmatprep.mubr.bf16.mxu0 0
      %3537 = vmatmul.mubr.bf16.gmra.mxu0 %v3329
      %v3538 = vpop.f32.mrf.mxu0
      %v3539 = vadd.f32 %v3351, %v3538
      %v3540 = vpop.f32.mrf.mxu0
      %v3541 = vpop.f32.mrf.mxu0
      %v3542 = vadd.f32 %v3351, %v3541
      %v3543 = vpop.f32.mrf.mxu0
      %3544 = vmatprep.mubr.bf16.mxu0 0
      %3545 = vmatmul.mubr.bf16.gmra.mxu0 %v3330
      %v3546 = vpop.f32.mrf.mxu0
      %v3547 = vadd.f32 %v3351, %v3546
      %v3548 = vpop.f32.mrf.mxu0
      %v3549 = vpop.f32.mrf.mxu0
      %v3550 = vadd.f32 %v3351, %v3549
      %v3551 = vpop.f32.mrf.mxu0
      %3552 = vmatprep.mubr.bf16.mxu0 0
      %3553 = vmatmul.mubr.bf16.gmra.mxu0 %v3331
      %v3554 = vpop.f32.mrf.mxu0
      %v3555 = vadd.f32 %v3351, %v3554
      %v3556 = vpop.f32.mrf.mxu0
      %v3557 = vpop.f32.mrf.mxu0
      %v3558 = vadd.f32 %v3351, %v3557
      %v3559 = vpop.f32.mrf.mxu0
      %3560 = vdwg.mxu0
      %3561 = vst [vmem:[%s197] sm:$0xff] %v3435
      %3562 = vst [vmem:[%s197 + $0x8] sm:$0xff] %v3438
      %3563 = vst [vmem:[%s197 + $0x10] sm:$0xff] %v3443
      %3564 = vst [vmem:[%s197 + $0x18] sm:$0xff] %v3446
      %3565 = vst [vmem:[%s197 + $0x20] sm:$0xff] %v3451
      %3566 = vst [vmem:[%s197 + $0x28] sm:$0xff] %v3454
      %3567 = vst [vmem:[%s197 + $0x30] sm:$0xff] %v3459
      %3568 = vst [vmem:[%s197 + $0x38] sm:$0xff] %v3462
      %3569 = vst [vmem:[%s197 + $0x40] sm:$0xff] %v3467
      %3570 = vst [vmem:[%s197 + $0x48] sm:$0xff] %v3470
      %3571 = vst [vmem:[%s197 + $0x50] sm:$0xff] %v3475
      %3572 = vst [vmem:[%s197 + $0x58] sm:$0xff] %v3478
      %3573 = vst [vmem:[%s197 + $0x60] sm:$0xff] %v3483
      %3574 = vst [vmem:[%s197 + $0x68] sm:$0xff] %v3486
      %3575 = vst [vmem:[%s197 + $0x70] sm:$0xff] %v3491
      %3576 = vst [vmem:[%s197 + $0x78] sm:$0xff] %v3494
      %3577 = vst [vmem:[%s197 + $0x80] sm:$0xff] %v3499
      %3578 = vst [vmem:[%s197 + $0x88] sm:$0xff] %v3502
      %3579 = vst [vmem:[%s197 + $0x90] sm:$0xff] %v3507
      %3580 = vst [vmem:[%s197 + $0x98] sm:$0xff] %v3510
      %3581 = vst [vmem:[%s197 + $0xa0] sm:$0xff] %v3515
      %3582 = vst [vmem:[%s197 + $0xa8] sm:$0xff] %v3518
      %3583 = vst [vmem:[%s197 + $0xb0] sm:$0xff] %v3523
      %3584 = vst [vmem:[%s197 + $0xb8] sm:$0xff] %v3526
      %3585 = vst [vmem:[%s197 + $0xc0] sm:$0xff] %v3531
      %3586 = vst [vmem:[%s197 + $0xc8] sm:$0xff] %v3534
      %3587 = vst [vmem:[%s197 + $0xd0] sm:$0xff] %v3539
      %3588 = vst [vmem:[%s197 + $0xd8] sm:$0xff] %v3542
      %3589 = vst [vmem:[%s197 + $0xe0] sm:$0xff] %v3547
      %3590 = vst [vmem:[%s197 + $0xe8] sm:$0xff] %v3550
      %3591 = vst [vmem:[%s197 + $0xf0] sm:$0xff] %v3555
      %3592 = vst [vmem:[%s197 + $0xf8] sm:$0xff] %v3558
      %p3593 = scmp.lt.s32.totalorder %s15, 1
      %s3594 = scalar_select %p3593, %s15, 1
      %s3595 = smul.addr %s3594, 32
      %s3596 = smul.addr %s3595, 8
      %s3597 = scalar_lea.vmem %s4, %s3596
      // Predicated region
      $region37: #{convolution_module.1} parent=35 // pred_check
        %p3598 = pneg %p122
      $region38: #{convolution_module.1} parent=35 // pred_check_branch
        %3600 = sbr.rel (%p3598) target = $region40
      $region39: #{convolution_module.1} parent=35 // pred_region
        _
      $region40: #{convolution_module.1} parent=35 // pred_fallthru
        _
    $region36: #{convolution_module.1} parent=5 // pred_fallthru
      _
    %p3601 = scmp.le.s32.totalorder 2, %s10
    // Predicated region
    $region41: #{convolution_module.1} parent=5 // pred_check
      %p3602 = pneg %p3601
    $region42: #{convolution_module.1} parent=5 // pred_check_branch
      %3604 = sbr.rel (%p3602) target = $region44
    $region43: #{convolution_module.1} parent=5 // pred_region
      %s3605 = ssub.s32 %s10, 2
      // Predicated region
      $region45: #{convolution_module.1} parent=43 // pred_check
        %p3606 = pneg %p128
      $region46: #{convolution_module.1} parent=43 // pred_check_branch
        %3608 = sbr.rel (%p3606) target = $region48
      $region47: #{convolution_module.1} parent=43 // pred_region
        %p3609 = scmp.lt.s32.totalorder %s16, 1
        %s3610 = scalar_select %p3609, %s16, 1
        %s3611 = smul.addr %s3610, 32
        %s3612 = smul.addr %s3611, 8
        %s3613 = scalar_lea.vmem %s4, %s3612
      $region48: #{convolution_module.1} parent=43 // pred_fallthru
        _
    $region44: #{convolution_module.1} parent=5 // pred_fallthru
      _
  $region6: #{convolution_module.1} parent=0 // loop_footer
    %s14 = sadd.s32 1, %s10
  $region7: #{convolution_module.1} parent=0 // loop_footer_branch
    %9 = sbr.rel target = $region3
  $region8: #{convolution_module.1} parent=0 // loop_exit
    _

</llo_original>
